<compile_context>
chip_gen: v5e
topology: v5e:2x2
jax: 0.10.0
libtpu: 0.0.40
codegen_flags: <defaults>
</compile_context>

<pallas_src>
import functools
import math

import jax
import jax.numpy as jnp
from jax import lax
from jax.experimental import pallas as pl
from jax.experimental.pallas import tpu as pltpu

_VMEM_LIMIT = 48 * 1024 * 1024  # safe on v5e/v6e (128 MiB) and v7x (64 MiB physical)


def _round_up(x, m):
    return (x + m - 1) // m * m


# ---------------------------------------------------------------------------
# Fused matmul kernel: [LN prologue] -> bf16 MXU dot -> bias -> act -> [residual]
# ---------------------------------------------------------------------------

def _pick_tile_m(M):
    for cand in (1024, 512, 384, 256, 128, 64, 32, 16, 8):
        if M % cand == 0 and M // cand >= 2:
            return cand
    return min(_round_up(M, 8), 1024)


def _pick_tile_n(N):
    if N <= 512:
        return N
    for cand in (512, 256, 128):
        if N % cand == 0:
            return cand
    return 128


def _pick_tile_k(K):
    if K <= 1024:
        return K
    for cand in (512, 256, 128):
        if K % cand == 0:
            return cand
    return 512


def _mm_kernel(*refs, single_k, has_ln, has_prelu, has_res, act, eps):
    it = iter(refs)
    a_ref = next(it)
    w_ref = next(it)
    b_ref = next(it)
    if has_ln:
        lng_ref = next(it)
        lnb_ref = next(it)
    if has_prelu:
        p_ref = next(it)
    if has_res:
        res_ref = next(it)
        g1_ref = next(it)
        g2_ref = next(it)
    o_ref = next(it)
    acc_ref = None if single_k else next(it)

    a = a_ref[...]
    if has_ln:
        af = a.astype(jnp.float32)
        mu = jnp.mean(af, axis=-1, keepdims=True)
        xc = af - mu
        var = jnp.mean(xc * xc, axis=-1, keepdims=True)
        a = (xc * lax.rsqrt(var + eps) * lng_ref[...] + lnb_ref[...]).astype(jnp.bfloat16)
    part = jnp.dot(a, w_ref[...], preferred_element_type=jnp.float32)

    def _epilogue(acc):
        r = acc + b_ref[...]
        if act == "relu":
            r = jnp.maximum(r, 0.0)
        elif act == "tanh":
            r = jnp.tanh(r)
        elif act == "prelu":
            r = jnp.where(r >= 0.0, r, p_ref[...] * r)
        if has_res:
            r = r * g1_ref[...] + res_ref[...] * g2_ref[...]
        o_ref[...] = r.astype(o_ref.dtype)

    if single_k:
        _epilogue(part)
    else:
        @pl.when(pl.program_id(2) == 0)
        def _():
            acc_ref[...] = jnp.zeros_like(acc_ref)

        acc_ref[...] += part

        @pl.when(pl.program_id(2) == pl.num_programs(2) - 1)
        def _():
            _epilogue(acc_ref[...])


@functools.partial(jax.jit, static_argnames=("act", "ln_eps", "tm", "tn", "tk"))
def _fused_matmul_impl(a, w, b, ln_g, ln_b, prelu, res, g1, g2,
                       *, act, ln_eps, tm, tn, tk):
    M, K = a.shape
    N = w.shape[1]
    has_ln = ln_g is not None
    has_prelu = prelu is not None
    has_res = res is not None
    assert act in (None, "relu", "tanh", "prelu")
    assert has_prelu == (act == "prelu")

    Mp, Kp, Np = _round_up(M, tm), _round_up(K, tk), _round_up(N, tn)
    ksteps = Kp // tk
    single_k = ksteps == 1
    assert not (has_ln and not single_k), "LN fusion needs a single K block"

    a_c = a.astype(jnp.bfloat16)
    w_c = w.astype(jnp.bfloat16)
    if Mp != M or Kp != K:
        a_c = jnp.pad(a_c, ((0, Mp - M), (0, Kp - K)))
    if Kp != K or Np != N:
        w_c = jnp.pad(w_c, ((0, Kp - K), (0, Np - N)))
    b2 = b.reshape(1, N).astype(jnp.float32)
    if Np != N:
        b2 = jnp.pad(b2, ((0, 0), (0, Np - N)))

    if single_k:
        grid = (Mp // tm, Np // tn)
        sem = ("parallel", "parallel")
        a_spec = pl.BlockSpec((tm, Kp), lambda i, j: (i, 0))
        w_spec = pl.BlockSpec((Kp, tn), lambda i, j: (0, j))
        vec_spec = pl.BlockSpec((1, tn), lambda i, j: (0, j))
        kvec_spec = pl.BlockSpec((1, Kp), lambda i, j: (0, 0))
        mn_spec = pl.BlockSpec((tm, tn), lambda i, j: (i, j))
        scratch = []
    else:
        grid = (Mp // tm, Np // tn, ksteps)
        sem = ("parallel", "parallel", "arbitrary")
        a_spec = pl.BlockSpec((tm, tk), lambda i, j, k: (i, k))
        w_spec = pl.BlockSpec((tk, tn), lambda i, j, k: (k, j))
        vec_spec = pl.BlockSpec((1, tn), lambda i, j, k: (0, j))
        kvec_spec = None
        mn_spec = pl.BlockSpec((tm, tn), lambda i, j, k: (i, j))
        scratch = [pltpu.VMEM((tm, tn), jnp.float32)]

    ops = [a_c, w_c, b2]
    in_specs = [a_spec, w_spec, vec_spec]
    if has_ln:
        ops += [ln_g.reshape(1, K).astype(jnp.float32),
                ln_b.reshape(1, K).astype(jnp.float32)]
        in_specs += [kvec_spec, kvec_spec]
    if has_prelu:
        pr = prelu.reshape(1, N).astype(jnp.float32)
        if Np != N:
            pr = jnp.pad(pr, ((0, 0), (0, Np - N)))
        ops.append(pr)
        in_specs.append(vec_spec)
    if has_res:
        r = res.astype(jnp.float32)
        if Mp != M or Np != N:
            r = jnp.pad(r, ((0, Mp - M), (0, Np - N)))
        ops.append(r)
        in_specs.append(mn_spec)
        for gv in (g1, g2):
            gg = gv.reshape(1, N).astype(jnp.float32)
            if Np != N:
                gg = jnp.pad(gg, ((0, 0), (0, Np - N)))
            ops.append(gg)
            in_specs.append(vec_spec)

    kernel = functools.partial(_mm_kernel, single_k=single_k, has_ln=has_ln,
                               has_prelu=has_prelu, has_res=has_res,
                               act=act, eps=ln_eps)
    out = pl.pallas_call(
        kernel,
        out_shape=jax.ShapeDtypeStruct((Mp, Np), jnp.float32),
        grid_spec=pltpu.PrefetchScalarGridSpec(
            num_scalar_prefetch=0, grid=grid,
            in_specs=in_specs, out_specs=mn_spec, scratch_shapes=scratch),
        compiler_params=pltpu.CompilerParams(
            dimension_semantics=sem, vmem_limit_bytes=_VMEM_LIMIT),
    )(*ops)
    if Mp != M or Np != N:
        out = out[:M, :N]
    return out


def fused_matmul(a, w, b=None, *, act=None, prelu=None,
                 ln_g=None, ln_b=None, ln_eps=1e-6,
                 res=None, res_g1=None, res_g2=None):
    """out = [res*g2 +] act(LN?(a) @ w + b) [*g1].  a:(M,K), w:(K,N)."""
    M, K = a.shape
    N = w.shape[1]
    if b is None:
        b = jnp.zeros((N,), jnp.float32)
    if act != "prelu":
        prelu = None
    elif prelu is None:
        prelu = jnp.full((N,), 0.25, jnp.float32)
    if res is not None:
        if res_g1 is None:
            res_g1 = jnp.ones((N,), jnp.float32)
        if res_g2 is None:
            res_g2 = jnp.ones((N,), jnp.float32)
    else:
        res_g1 = res_g2 = None
    return _fused_matmul_impl(a, w, b, ln_g, ln_b, prelu, res, res_g1, res_g2,
                              act=act, ln_eps=float(ln_eps),
                              tm=_pick_tile_m(M), tn=_pick_tile_n(N),
                              tk=_pick_tile_k(K))


# ---------------------------------------------------------------------------
# Row LayerNorm kernel (used by the MLPMixer; NAF LayerNorm2d is fused above)
# ---------------------------------------------------------------------------

def _ln_kernel(x_ref, g_ref, b_ref, o_ref, *, eps):
    x = x_ref[...].astype(jnp.float32)
    mu = jnp.mean(x, axis=-1, keepdims=True)
    xc = x - mu
    var = jnp.mean(xc * xc, axis=-1, keepdims=True)
    o_ref[...] = (xc * lax.rsqrt(var + eps) * g_ref[...] + b_ref[...]).astype(o_ref.dtype)


@functools.partial(jax.jit, static_argnames=("eps",))
def layernorm_rows(x, g, b, *, eps):
    R, D = x.shape
    TR = min(512, _round_up(R, 8))
    Rp = _round_up(R, TR)
    x_p = jnp.pad(x, ((0, Rp - R), (0, 0))) if Rp != R else x
    out = pl.pallas_call(
        functools.partial(_ln_kernel, eps=eps),
        out_shape=jax.ShapeDtypeStruct((Rp, D), jnp.float32),
        grid_spec=pltpu.PrefetchScalarGridSpec(
            num_scalar_prefetch=0, grid=(Rp // TR,),
            in_specs=[pl.BlockSpec((TR, D), lambda i: (i, 0)),
                      pl.BlockSpec((1, D), lambda i: (0, 0)),
                      pl.BlockSpec((1, D), lambda i: (0, 0))],
            out_specs=pl.BlockSpec((TR, D), lambda i: (i, 0))),
        compiler_params=pltpu.CompilerParams(
            dimension_semantics=("parallel",), vmem_limit_bytes=_VMEM_LIMIT),
    )(x_p, g.reshape(1, D), b.reshape(1, D))
    return out[:R]


# ---------------------------------------------------------------------------
# 3x3 SAME conv: halo-row tap-accumulation kernel (+ im2col fallback)
# ---------------------------------------------------------------------------

def _conv3x3_halo_kernel(xm_ref, xh_ref, w_ref, b_ref, o_ref, *, trh, W):
    xm = xm_ref[...]                               # (trh, W+2, C) bf16
    xh = xh_ref[...]                               # (8,   W+2, C) bf16
    xall = jnp.concatenate([xm, xh[:2]], axis=0)   # (trh+2, W+2, C)
    C = xm.shape[-1]
    Nout = o_ref.shape[-1]
    acc = jnp.zeros((trh * W, Nout), jnp.float32)
    for dj in range(3):
        xj = xall[:, dj:dj + W, :]                 # (trh+2, W, C)
        for di in range(3):
            xs = xj[di:di + trh]                   # (trh, W, C)
            acc = acc + jnp.dot(xs.reshape(trh * W, C), w_ref[3 * di + dj],
                                preferred_element_type=jnp.float32)
    r = acc + b_ref[...]
    o_ref[...] = r.reshape(trh, W, Nout).astype(o_ref.dtype)


@functools.partial(jax.jit, static_argnames=("trh",))
def _conv3x3_halo_impl(x, w9, b, *, trh):
    B, H, W, C = x.shape
    N = w9.shape[-1]
    xp = jnp.pad(x.astype(jnp.bfloat16), ((0, 0), (1, 7), (1, 1), (0, 0)))
    wb = w9.astype(jnp.bfloat16)
    b2 = b.reshape(1, N).astype(jnp.float32)
    Wp = W + 2
    kernel = functools.partial(_conv3x3_halo_kernel, trh=trh, W=W)
    return pl.pallas_call(
        kernel,
        out_shape=jax.ShapeDtypeStruct((B, H, W, N), jnp.float32),
        grid_spec=pltpu.PrefetchScalarGridSpec(
            num_scalar_prefetch=0, grid=(B, H // trh),
            in_specs=[
                pl.BlockSpec((None, trh, Wp, C), lambda bi, i: (bi, i, 0, 0)),
                pl.BlockSpec((None, 8, Wp, C),
                             lambda bi, i: (bi, ((i + 1) * trh) // 8, 0, 0)),
                pl.BlockSpec((9, C, N), lambda bi, i: (0, 0, 0)),
                pl.BlockSpec((1, N), lambda bi, i: (0, 0)),
            ],
            out_specs=pl.BlockSpec((None, trh, W, N), lambda bi, i: (bi, i, 0, 0))),
        compiler_params=pltpu.CompilerParams(
            dimension_semantics=("parallel", "parallel"),
            vmem_limit_bytes=_VMEM_LIMIT),
    )(xp, xp, wb, b2)


@jax.jit
def _conv3x3_im2col_impl(x, w_flat, b):
    B, H, W, C = x.shape
    xb = x.astype(jnp.bfloat16)
    xp = jnp.pad(xb, ((0, 0), (1, 1), (1, 1), (0, 0)))
    pat = jnp.concatenate(
        [xp[:, i:i + H, j:j + W, :] for i in range(3) for j in range(3)], axis=-1)
    y = fused_matmul(pat.reshape(-1, 9 * C), w_flat, b)
    return y.reshape(B, H, W, w_flat.shape[1])


_HALO_OK = {}


def _halo_available():
    """Runtime self-check of the halo conv kernel vs. the im2col path."""
    if "ok" not in _HALO_OK:
        ok = False
        try:
            xt = jax.random.normal(jax.random.PRNGKey(123), (1, 64, 64, 32), jnp.float32)
            wt = 0.05 * jax.random.normal(jax.random.PRNGKey(7), (9, 32, 3), jnp.float32)
            bt = 0.01 * jnp.ones((3,), jnp.float32)
            got = jax.block_until_ready(_conv3x3_halo_impl(xt, wt, bt, trh=32))
            ref = jax.block_until_ready(
                _conv3x3_im2col_impl(xt, wt.reshape(9 * 32, 3), bt))
            ok = bool(jnp.allclose(got, ref, rtol=5e-2, atol=5e-2))
        except Exception:
            ok = False
        _HALO_OK["ok"] = ok
    return _HALO_OK["ok"]


def conv2d_3x3(x_nhwc, w9, b):
    """3x3 SAME conv, stride 1, NHWC.  w9: (9, Cin, Cout), tap order (kh, kw).
    NOTE: call eagerly (not inside jit) so the halo fallback can catch errors."""
    B, H, W, C = x_nhwc.shape
    trh = next((t for t in (32, 16, 8) if H % t == 0), 0)
    if C >= 8 and trh and W % 8 == 0 and _halo_available():
        try:
            return jax.block_until_ready(_conv3x3_halo_impl(x_nhwc, w9, b, trh=trh))
        except Exception:
            pass
    w_flat = w9.reshape(w9.shape[0] * w9.shape[1], w9.shape[2])
    return _conv3x3_im2col_impl(x_nhwc, w_flat, b)


# ---------------------------------------------------------------------------
# Other conv / norm helpers built on the fused matmul
# ---------------------------------------------------------------------------

def conv1x1(x_nhwc, w, b=None, **kw):
    B, H, W, C = x_nhwc.shape
    N = w.shape[1]
    res = kw.pop("res", None)
    if res is not None:
        res = res.reshape(-1, N)
    y = fused_matmul(x_nhwc.reshape(-1, C), w, b, res=res, **kw)
    return y.reshape(B, H, W, N)


@jax.jit
def conv2d_2x2_s2(x_nhwc, w_flat, b):
    B, H, W, C = x_nhwc.shape
    xb = x_nhwc.astype(jnp.bfloat16)
    xr = xb.reshape(B, H // 2, 2, W // 2, 2, C).transpose(0, 1, 3, 2, 4, 5)
    xr = xr.reshape(B, H // 2, W // 2, 4 * C)
    y = fused_matmul(xr.reshape(-1, 4 * C), w_flat, b)
    return y.reshape(B, H // 2, W // 2, w_flat.shape[1])


@jax.jit
def conv3d_3x3x3(x_ncdhw, w_flat, b):
    B, C, D, H, W = x_ncdhw.shape
    x = x_ncdhw.transpose(0, 2, 3, 4, 1).astype(jnp.bfloat16)   # NDHWC
    xp = jnp.pad(x, ((0, 0), (1, 1), (1, 1), (1, 1), (0, 0)))
    pat = jnp.concatenate(
        [xp[:, i:i + D, j:j + H, k:k + W, :]
         for i in range(3) for j in range(3) for k in range(3)], axis=-1)
    y = fused_matmul(pat.reshape(-1, 27 * C), w_flat, b)
    return y.reshape(B, D, H, W, w_flat.shape[1]).transpose(0, 4, 1, 2, 3)


@jax.jit
def _conv1d_k3_impl(x_bcl, w_flat, b, prelu):
    # nn.Conv1d(Cin, Cout, 3, padding=1) on (B, Cin, L); patch order (kt, cin).
    B, C, L = x_bcl.shape
    xt = x_bcl.transpose(0, 2, 1).astype(jnp.bfloat16)          # (B, L, C)
    xp = jnp.pad(xt, ((0, 0), (1, 1), (0, 0)))
    pat = jnp.concatenate([xp[:, i:i + L, :] for i in range(3)], axis=-1)
    act = None if prelu is None else "prelu"
    y = fused_matmul(pat.reshape(-1, 3 * C), w_flat, b, act=act, prelu=prelu)
    return y.reshape(B, L, w_flat.shape[1]).transpose(0, 2, 1)


def conv1d_k3(x_bcl, w_flat, b, prelu=None):
    return _conv1d_k3_impl(x_bcl, w_flat, b, prelu)


@jax.jit
def depthwise3x3(x_nhwc, w_hwio, b):
    # NAFBlock.conv2 (groups == channels). Negligible FLOPs vs the 1x1 matmuls.
    # TODO(synk): depthwise conv kept in lax (grouped conv has no clean matmul form).
    C = x_nhwc.shape[-1]
    y = lax.conv_general_dilated(
        x_nhwc, w_hwio, window_strides=(1, 1), padding="SAME",
        dimension_numbers=("NHWC", "HWIO", "NHWC"), feature_group_count=C)
    return y + b


def pixel_shuffle_nhwc(x, r=2):
    B, H, W, C = x.shape
    co = C // (r * r)
    x = x.reshape(B, H, W, co, r, r).transpose(0, 1, 4, 2, 5, 3)
    return x.reshape(B, H * r, W * r, co)


# ---------------------------------------------------------------------------
# Plain-JAX glue ops (interpolation, blur, fft, grid_sample)
# ---------------------------------------------------------------------------

@functools.partial(jax.jit, static_argnames=("oh", "ow"))
def resize_bilinear(x, *, oh, ow):
    # F.interpolate(mode='bilinear', align_corners=True)
    B, C, H, W = x.shape
    if (H, W) == (oh, ow):
        return x
    ys = jnp.linspace(0.0, H - 1.0, oh)
    xs = jnp.linspace(0.0, W - 1.0, ow)
    y0 = jnp.clip(jnp.floor(ys), 0, max(H - 2, 0)).astype(jnp.int32)
    x0 = jnp.clip(jnp.floor(xs), 0, max(W - 2, 0)).astype(jnp.int32)
    y1 = jnp.minimum(y0 + 1, H - 1)
    x1 = jnp.minimum(x0 + 1, W - 1)
    fy = (ys - y0).astype(jnp.float32)
    fx = (xs - x0).astype(jnp.float32)
    rows = (x[:, :, y0, :] * (1 - fy)[None, None, :, None]
            + x[:, :, y1, :] * fy[None, None, :, None])
    return (rows[:, :, :, x0] * (1 - fx)[None, None, None, :]
            + rows[:, :, :, x1] * fx[None, None, None, :])


@functools.partial(jax.jit, static_argnames=("ksize", "sigma"))
def gaussian_blur(x, *, ksize=33, sigma=1.05):
    # TODO(synk): torchvision GaussianBlur samples sigma ~ U(0.1, 2.0) per call;
    # fixed here to a deterministic sigma for reproducibility.
    B, C, H, W = x.shape
    half = (ksize - 1) * 0.5
    t = jnp.linspace(-half, half, ksize)
    k = jnp.exp(-0.5 * (t / sigma) ** 2)
    k = (k / jnp.sum(k)).astype(jnp.float32)
    pad = ksize // 2
    dn = ("NCHW", "OIHW", "NCHW")
    wrow = jnp.broadcast_to(k.reshape(1, 1, 1, ksize), (C, 1, 1, ksize))
    xp = jnp.pad(x, ((0, 0), (0, 0), (0, 0), (pad, pad)), mode="reflect")
    xh = lax.conv_general_dilated(xp, wrow, (1, 1), "VALID",
                                  dimension_numbers=dn, feature_group_count=C)
    wcol = jnp.broadcast_to(k.reshape(1, 1, ksize, 1), (C, 1, ksize, 1))
    xp2 = jnp.pad(xh, ((0, 0), (0, 0), (pad, pad), (0, 0)), mode="reflect")
    return lax.conv_general_dilated(xp2, wcol, (1, 1), "VALID",
                                    dimension_numbers=dn, feature_group_count=C)


@jax.jit
def slice_op(bilateral_grid, guidemap):
    # Slice: F.grid_sample(5D, trilinear, zeros padding, align_corners=False).
    # TODO(synk): grid_sample gather done in plain JAX (data-dependent gather).
    N, C, D, Hg, Wg = bilateral_grid.shape
    _, _, H, W = guidemap.shape
    hg = (jnp.arange(H, dtype=jnp.float32) / (H - 1)) * 2.0 - 1.0
    wg = (jnp.arange(W, dtype=jnp.float32) / (W - 1)) * 2.0 - 1.0
    gy = jnp.broadcast_to(hg[None, :, None], (N, H, W))
    gx = jnp.broadcast_to(wg[None, None, :], (N, H, W))
    gz = guidemap[:, 0, :, :]
    ix = ((gx + 1.0) * Wg - 1.0) * 0.5
    iy = ((gy + 1.0) * Hg - 1.0) * 0.5
    iz = ((gz + 1.0) * D - 1.0) * 0.5

    g = bilateral_grid.transpose(0, 2, 3, 4, 1)  # (N, D, Hg, Wg, C)
    bidx = jnp.arange(N)[:, None, None]
    x0, y0, z0 = jnp.floor(ix), jnp.floor(iy), jnp.floor(iz)

    out = jnp.zeros((N, H, W, C), jnp.float32)
    for dz in (0, 1):
        for dy in (0, 1):
            for dx in (0, 1):
                xc, yc, zc = x0 + dx, y0 + dy, z0 + dz
                wgt = ((1.0 - jnp.abs(ix - xc)) * (1.0 - jnp.abs(iy - yc))
                       * (1.0 - jnp.abs(iz - zc)))
                valid = ((xc >= 0) & (xc < Wg) & (yc >= 0) & (yc < Hg)
                         & (zc >= 0) & (zc < D))
                xi = jnp.clip(xc, 0, Wg - 1).astype(jnp.int32)
                yi = jnp.clip(yc, 0, Hg - 1).astype(jnp.int32)
                zi = jnp.clip(zc, 0, D - 1).astype(jnp.int32)
                val = g[bidx, zi, yi, xi]
                out = out + (wgt * valid)[..., None] * val
    return out.transpose(0, 3, 1, 2)


# ---------------------------------------------------------------------------
# Sub-modules
# ---------------------------------------------------------------------------

def guide_nn(x_nchw, p):
    x = x_nchw.transpose(0, 2, 3, 1)
    # ConvBlock(3,16,1) + BatchNorm2d(16) + ReLU. BN in eval mode with default
    # running stats (mean=0, var=1, gamma=1, beta=0) -> 1/sqrt(1+eps) scale folded
    # into the conv weights.  (Train mode would use batch statistics.)
    s = 1.0 / math.sqrt(1.0 + 1e-5)
    h = conv1x1(x, p["c1_w"] * s, p["c1_b"] * s, act="relu")
    h = conv1x1(h, p["c2_w"], p["c2_b"], act="tanh")  # ConvBlock(16,1,1) + Tanh
    return h.transpose(0, 3, 1, 2)


def naf_block(x, p):
    # x: (B, H, W, c); LayerNorm2d and residual adds fused into the 1x1 matmuls.
    B, _, _, c = x.shape
    inp = x
    h = conv1x1(x, p["c1_w"], p["c1_b"],
                ln_g=p["n1_g"], ln_b=p["n1_b"], ln_eps=1e-6)   # LN1 + conv1 (c->2c)
    h = depthwise3x3(h, p["c2_w"], p["c2_b"])
    a, bb = jnp.split(h, 2, axis=-1)                            # SimpleGate
    x1 = a * bb                                                 # (B,H,W,c)
    pooled = jnp.mean(x1, axis=(1, 2))                          # AdaptiveAvgPool2d(1)
    sca = fused_matmul(pooled, p["sca_w"], p["sca_b"]).reshape(B, 1, 1, c)
    # y = inp + conv3(x1*sca) * beta  (residual fused into conv3 epilogue)
    y = conv1x1(x1 * sca, p["c3_w"], p["c3_b"], res=inp, res_g1=p["beta"])
    # h = conv4(LN2(y)) + x1*sg_b  (LN prologue + residual epilogue fused)
    h = conv1x1(y, p["c4_w"], p["c4_b"], ln_g=p["n2_g"], ln_b=p["n2_b"],
                ln_eps=1e-6, res=x1, res_g2=p["sg_b"])
    a2, b2 = jnp.split(h, 2, axis=-1)                           # SimpleGate
    # out = inp + conv5(a2*b2) * gamma
    return conv1x1(a2 * b2, p["c5_w"], p["c5_b"], res=inp, res_g1=p["gamma"])


def nafnet(x_nchw, p):
    # Input is always 256x256 here (divisible by 2**4): check_image_size is a no-op.
    inp = x_nchw.transpose(0, 2, 3, 1)  # NHWC
    x = conv2d_3x3(inp, p["intro_w"], p["intro_b"])
    encs = []
    for blocks, down in zip(p["enc"], p["down"]):
        for bp in blocks:
            x = naf_block(x, bp)
        encs.append(x)
        x = conv2d_2x2_s2(x, down["w"], down["b"])
    for bp in p["mid"]:
        x = naf_block(x, bp)
    for blocks, up, skip in zip(p["dec"], p["up"], encs[::-1]):
        x = conv1x1(x, up["w"], None)        # Conv2d(c, 2c, 1, bias=False)
        x = pixel_shuffle_nhwc(x, 2)
        x = x + skip
        for bp in blocks:
            x = naf_block(x, bp)
    x = conv2d_3x3(x, p["end_w"], p["end_b"])
    x = x + inp
    return x.transpose(0, 3, 1, 2)


def mlp_mixer(x_nchw, p):
    # image 128, channels 3, patch 16, dim 768, 64 tokens, depth 12.
    B = x_nchw.shape[0]
    ph = pw = 16
    h = w = 128 // 16
    xr = x_nchw.reshape(B, 3, h, ph, w, pw).transpose(0, 2, 4, 3, 5, 1)
    t = xr.reshape(B, h * w, ph * pw * 3)                                # (B,64,768)
    t = fused_matmul(t.reshape(-1, 768), p["stem_w"], p["stem_b"]).reshape(B, 64, 768)
    for lp in p["layers"]:
        # token mixing: LN -> Conv1d(64,256,1)+PReLU -> Conv1d(256,64,1)+PReLU
        n = layernorm_rows(t.reshape(-1, 768), lp["ln1_g"], lp["ln1_b"], eps=1e-5)
        n = n.reshape(B, 64, 768).transpose(0, 2, 1).reshape(-1, 64)     # (B*768,64)
        n = fused_matmul(n, lp["tok_w1"], lp["tok_b1"], act="prelu", prelu=lp["tok_p1"])
        n = fused_matmul(n, lp["tok_w2"], lp["tok_b2"], act="prelu", prelu=lp["tok_p2"])
        n = n.reshape(B, 768, 64).transpose(0, 2, 1)
        t = conv1d_k3(n + t, lp["con1a_w"], lp["con1a_b"])
        # channel mixing: LN (fused) -> Linear(768,384)+PReLU -> Linear(384,768)+PReLU
        t2d = t.reshape(-1, 768)
        n = fused_matmul(t2d, lp["ch_w1"], lp["ch_b1"], act="prelu", prelu=lp["ch_p1"],
                         ln_g=lp["ln2_g"], ln_b=lp["ln2_b"], ln_eps=1e-5)
        n = fused_matmul(n, lp["ch_w2"], lp["ch_b2"], act="prelu", prelu=lp["ch_p2"],
                         res=t2d)                                        # + x fused
        t = conv1d_k3(n.reshape(B, 64, 768), lp["con1b_w"], lp["con1b_b"])
    t = layernorm_rows(t.reshape(-1, 768), p["ln_g"], p["ln_b"], eps=1e-5)
    t = t.reshape(B, 64, 768)
    t = conv1d_k3(t, p["post1_w"], p["post1_b"], prelu=p["post1_p"])
    t = conv1d_k3(t, p["post2_w"], p["post2_b"], prelu=p["post2_p"])
    y = t.reshape(B, h, w, ph, pw, 3).transpose(0, 5, 1, 3, 2, 4)
    return y.reshape(B, 3, 128, 128)


def pyramid_forward(x, params):
    B, C, H, W = x.shape
    g = guide_nn(x, params["guide"])                                  # (B,1,H,W)
    x1 = resize_bilinear(x, oh=256, ow=256)
    x_g = gaussian_blur(x1, ksize=33, sigma=1.05)
    u_f = nafnet(x_g, params["nafnet"])
    u_f = resize_bilinear(u_f, oh=H, ow=W)
    xf = jnp.fft.fft2(x)                                              # TODO(synk): FFT stays in XLA
    feat_r = resize_bilinear(jnp.real(xf).astype(jnp.float32), oh=128, ow=128)
    feat_i = resize_bilinear(jnp.imag(xf).astype(jnp.float32), oh=128, ow=128)
    x1m = mlp_mixer(feat_r, params["f1"]).reshape(-1, 12, 16, 16, 16)
    x2m = mlp_mixer(feat_i, params["f2"]).reshape(-1, 12, 16, 16, 16)
    coeff = conv3d_3x3x3(jnp.concatenate([x1m, x2m], axis=1),
                         params["sq_w"], params["sq_b"])              # (B,3,16,16,16)
    attention_map = slice_op(coeff, g)                                # (B,3,H,W)
    sm_in = jnp.concatenate([attention_map, u_f], axis=1).transpose(0, 2, 3, 1)
    sm = conv2d_3x3(sm_in, params["smooth_w"], params["smooth_b"]).transpose(0, 3, 1, 2)
    return 0.5 * sm + 0.5 * x


# ---------------------------------------------------------------------------
# Deterministic parameter initialization (synthetic weights, correct shapes)
# ---------------------------------------------------------------------------

class _Init:
    def __init__(self, seed):
        self._key = jax.random.PRNGKey(seed)

    def normal(self, shape, scale=0.02):
        self._key, sub = jax.random.split(self._key)
        return (scale * jax.random.normal(sub, shape)).astype(jnp.float32)


def init_params(seed=0):
    pi = _Init(seed)
    nrm = pi.normal
    zeros = lambda *s: jnp.zeros(s, jnp.float32)
    ones = lambda *s: jnp.ones(s, jnp.float32)
    prelu = lambda n: jnp.full((n,), 0.25, jnp.float32)   # nn.PReLU init

    def mixer(depth):
        layers = []
        for _ in range(depth):
            layers.append(dict(
                ln1_g=ones(768), ln1_b=zeros(768),
                tok_w1=nrm((64, 256)), tok_b1=zeros(256), tok_p1=prelu(256),
                tok_w2=nrm((256, 64)), tok_b2=zeros(64), tok_p2=prelu(64),
                con1a_w=nrm((3 * 64, 64)), con1a_b=zeros(64),
                ln2_g=ones(768), ln2_b=zeros(768),
                ch_w1=nrm((768, 384)), ch_b1=zeros(384), ch_p1=prelu(384),
                ch_w2=nrm((384, 768)), ch_b2=zeros(768), ch_p2=prelu(768),
                con1b_w=nrm((3 * 64, 64)), con1b_b=zeros(64),
            ))
        return dict(stem_w=nrm((768, 768)), stem_b=zeros(768), layers=layers,
                    ln_g=ones(768), ln_b=zeros(768),
                    post1_w=nrm((3 * 64, 64)), post1_b=zeros(64), post1_p=prelu(64),
                    post2_w=nrm((3 * 64, 64)), post2_b=zeros(64), post2_p=prelu(64))

    def nafblock(c):
        return dict(
            n1_g=ones(c), n1_b=zeros(c),
            c1_w=nrm((c, 2 * c)), c1_b=zeros(2 * c),
            c2_w=nrm((3, 3, 1, 2 * c)), c2_b=zeros(2 * c),
            sca_w=nrm((c, c)), sca_b=zeros(c),
            c3_w=nrm((c, c)), c3_b=zeros(c),
            n2_g=ones(c), n2_b=zeros(c),
            c4_w=nrm((c, c)), c4_b=zeros(c),
            c5_w=nrm((c // 2, c)), c5_b=zeros(c),
            beta=zeros(c), gamma=zeros(c), sg_b=zeros(c),   # PyTorch inits these to 0
        )

    def naf(width=32, enc=(2, 2, 2, 20), mid=2, dec=(2, 2, 2, 2)):
        p = dict(intro_w=nrm((9, 3, width)), intro_b=zeros(width),
                 enc=[], down=[], mid=[], up=[], dec=[],
                 end_w=nrm((9, width, 3)), end_b=zeros(3))
        chan = width
        for num in enc:
            p["enc"].append([nafblock(chan) for _ in range(num)])
            p["down"].append(dict(w=nrm((4 * chan, 2 * chan)), b=zeros(2 * chan)))
            chan *= 2
        p["mid"] = [nafblock(chan) for _ in range(mid)]
        for num in dec:
            p["up"].append(dict(w=nrm((chan, 2 * chan))))
            chan //= 2
            p["dec"].append([nafblock(chan) for _ in range(num)])
        return p

    return dict(
        guide=dict(c1_w=nrm((3, 16)), c1_b=zeros(16),
                   c2_w=nrm((16, 1)), c2_b=zeros(1)),
        f1=mixer(12),
        f2=mixer(12),
        nafnet=naf(),
        sq_w=nrm((27 * 24, 3)), sq_b=zeros(3),        # Conv3d(24, 3, 3, pad=1)
        smooth_w=nrm((9, 6, 3)), smooth_b=zeros(3),   # Conv2d(6, 3, 3, pad=1)
    )


# ---------------------------------------------------------------------------

if __name__ == "__main__":
    params = init_params(seed=0)
    x = jax.random.normal(jax.random.PRNGKey(0), (1, 3, 64, 64), jnp.float32)
    out = pyramid_forward(x, params)
    out = jax.block_until_ready(out)
    assert out.shape == (1, 3, 64, 64), out.shape
    assert bool(jnp.all(jnp.isfinite(out)))
    print("KERNEL_OK")
</pallas_src>

<mosaic_0001>
module attributes {stable_mosaic.version = 11 : i64} {
  func.func @_mm_kernel(%arg0: i32, %arg1: i32, %arg2: memref<1024x3xbf16, #tpu.memory_space<vmem>>, %arg3: memref<3x16xbf16, #tpu.memory_space<vmem>>, %arg4: memref<1x16xf32, #tpu.memory_space<vmem>>, %arg5: memref<1024x16xf32, #tpu.memory_space<vmem>>) attributes {dimension_semantics = [#tpu.dimension_semantics<parallel>, #tpu.dimension_semantics<parallel>], iteration_bounds = array<i64: 4, 1>, scalar_prefetch = 0 : i64, scratch_operands = 0 : i64, tpu.core_type = #tpu.core_type<tc>, window_params = [{transform_indices = @transform_0, window_bounds = array<i64: 1024, 3>}, {transform_indices = @transform_1, window_bounds = array<i64: 3, 16>}, {transform_indices = @transform_2, window_bounds = array<i64: 1, 16>}, {transform_indices = @transform_3, window_bounds = array<i64: 1024, 16>}]} {
    %c0 = arith.constant 0 : index
    %c0_0 = arith.constant 0 : index
    %0 = vector.load %arg2[%c0, %c0_0] : memref<1024x3xbf16, #tpu.memory_space<vmem>>, vector<1024x3xbf16>
    %c0_1 = arith.constant 0 : index
    %c0_2 = arith.constant 0 : index
    %1 = vector.load %arg3[%c0_1, %c0_2] : memref<3x16xbf16, #tpu.memory_space<vmem>>, vector<3x16xbf16>
    %cst = arith.constant dense<0.000000e+00> : vector<1024x16xf32>
    %2 = tpu.matmul %0, %1, %cst {dimension_numbers = #tpu.dot_dimension_numbers<[1], [0], [0], [1], [0, 0, 1, 1], [], []>} : vector<1024x3xbf16>, vector<3x16xbf16>, vector<1024x16xf32> -> vector<1024x16xf32>
    %c0_3 = arith.constant 0 : index
    %c0_4 = arith.constant 0 : index
    %3 = vector.load %arg4[%c0_3, %c0_4] : memref<1x16xf32, #tpu.memory_space<vmem>>, vector<1x16xf32>
    %4 = vector.broadcast %3 : vector<1x16xf32> to vector<1024x16xf32>
    %5 = arith.addf %2, %4 : vector<1024x16xf32>
    %cst_5 = arith.constant 0.000000e+00 : f32
    %6 = vector.broadcast %cst_5 : f32 to vector<1024x16xf32>
    %7 = arith.maximumf %5, %6 : vector<1024x16xf32>
    %c0_6 = arith.constant 0 : index
    %c0_7 = arith.constant 0 : index
    %8 = vector.load %arg5[%c0_6, %c0_7] : memref<1024x16xf32, #tpu.memory_space<vmem>>, vector<1024x16xf32>
    tpu.vector_store %arg5[%c0_6, %c0_7], %7 {strides = array<i32>} : memref<1024x16xf32, #tpu.memory_space<vmem>>, vector<1024x16xf32>,
    return
  }
  func.func @transform_0(%arg0: i32, %arg1: i32) -> (i32, i32) {
    %c0_i32 = arith.constant 0 : i32
    %c0_i32_0 = arith.constant 0 : i32
    return %arg0, %c0_i32 : i32, i32
  }
  func.func @transform_1(%arg0: i32, %arg1: i32) -> (i32, i32) {
    %c0_i32 = arith.constant 0 : i32
    %c0_i32_0 = arith.constant 0 : i32
    return %c0_i32, %arg1 : i32, i32
  }
  func.func @transform_2(%arg0: i32, %arg1: i32) -> (i32, i32) {
    %c0_i32 = arith.constant 0 : i32
    %c0_i32_0 = arith.constant 0 : i32
    return %c0_i32, %arg1 : i32, i32
  }
  func.func @transform_3(%arg0: i32, %arg1: i32) -> (i32, i32) {
    %c0_i32 = arith.constant 0 : i32
    return %arg0, %arg1 : i32, i32
  }
}

</mosaic_0001>

<llo_original>
// kernel: _fused_matmul_impl.1
$region0: #{_fused_matmul_impl.1}
  #allocation0 [shape = 'u32[]', space=smem, size = 0x4, offset = 0x4, fixed_abs, tag = 'smem constant byte address 0x4 - core index']
  #allocation1 [shape = 'u32[72,128]{1,0:T(1,128)}', space=vmem, size = 0x9000, scoped, tag = 'internal scratch']
  %s0 = inlined_call_operand.vmem [shape: bf16[4096,3], index: 0, kind: input, shape index: {}]
  %s1 = inlined_call_operand.vmem [shape: bf16[3,16], index: 1, kind: input, shape index: {}]
  %s2 = inlined_call_operand.hbm [shape: f32[1,16], index: 2, kind: input, shape index: {}]
  %s3 = inlined_call_operand.vmem [shape: f32[4096,16], index: 3, kind: output, shape index: {}]
  %s4 = sld [smem:[#allocation0]]
  $region49: #{_fused_matmul_impl.1} parent=0
    _
  %s6 = ssub.s32 1, %s4
  %s7 = scalar_select 0, %s6, %s4
  $region1: #{_fused_matmul_impl.1} parent=0
    #allocation2 [shape = 'u8[512]{0}', space=vmem, size = 0x400, scoped, tag = 'input window, operand 2, single buffered']
    #allocation3 [shape = 's32[2]{0}', space=sflag, size = 0x8, scoped, tag = 'scoped memory for _fused_matmul_impl.1']
    %8 = vsyncpa [#allocation3], 0
    loop: start=0, step=1, limit=6
    $region2: #{_fused_matmul_impl.1} parent=1 // loop_pre_header
      _
    $region3: #{_fused_matmul_impl.1} parent=1 // loop_header
      %s10 = sphi 0, %s14
      %p11 = scmp.ge.s32.totalorder %s10, 6
      %s17 = sphi 0, %s29
      %s18 = sphi 0, %s25
      %s19 = sphi 0, %s17
      %s20 = sphi 0, %s18
      %s21 = sphi 0, %s19
      %s22 = sphi 0, %s20
      %s32 = sphi 0, %s34
      %s35 = sphi 0, %s32
      %s36 = sphi 0, %s35
      %s52 = sphi 0, %s36
      %s58 = sphi 0, %s60
      %s61 = sphi 0, %s58
      %s62 = sphi 0, %s61
      %s78 = sphi 0, %s62
      %s84 = sphi 0, %s86
      %s87 = sphi 0, %s84
      %s88 = sphi 0, %s87
      %s104 = sphi 0, %s88
      %s112 = sphi 0, %s114
      %s115 = sphi 0, %s112
      %s116 = sphi 0, %s115
      %s132 = sphi 0, %s116
    $region4: #{_fused_matmul_impl.1} parent=1 // loop_header_branch
      %13 = sbr.rel (%p11) target = $region8
    $region5: #{_fused_matmul_impl.1} parent=1 // loop_body
      %s15 = ssub.s32 %s10, 1
      %s16 = ssub.s32 %s10, 2
      %s23 = sadd.s32 1, %s18
      %p24 = scmp.ge.s32.totalorder %s23, 1
      %s25 = scalar_select %p24, 0, %s23
      %s26 = sadd.s32 1, %s17
      %s27 = scalar_select %p24, %s26, %s17
      %p28 = scmp.ge.s32.totalorder %s27, 4
      %s29 = scalar_select %p28, 0, %s27
      %s30 = ssub.s32 %s17, %s29
      %p31 = scmp.eq.s32.totalorder %s30, 0
      %s33 = sadd.s32 %s32, 1
      %s34 = scalar_select %p31, %s32, %s33
      %p37 = pneg %p31
      %p38 = scmp.eq.s32.totalorder %s10, 3
      %p39 = por %p37, %p38
      %p40 = scmp.ne.s32.totalorder %s32, %s35
      %p41 = scmp.eq.s32.totalorder %s10, 0
      %p42 = por %p40, %p41
      %p43 = scmp.ne.s32.totalorder %s32, %s35
      %p44 = scmp.eq.s32.totalorder %s15, 3
      %p45 = por %p43, %p44
      %p46 = scmp.ne.s32.totalorder %s35, %s36
      %p47 = scmp.eq.s32.totalorder %s15, 0
      %p48 = por %p46, %p47
      %p49 = scmp.ne.s32.totalorder %s35, %s36
      %p50 = scmp.eq.s32.totalorder %s16, 3
      %p51 = por %p49, %p50
      %p53 = scmp.ne.s32.totalorder %s36, %s52
      %p54 = scmp.eq.s32.totalorder %s16, 0
      %p55 = por %p53, %p54
      %s56 = ssub.s32 %s18, %s25
      %p57 = scmp.eq.s32.totalorder %s56, 0
      %s59 = sadd.s32 %s58, 1
      %s60 = scalar_select %p57, %s58, %s59
      %p63 = pneg %p57
      %p64 = scmp.eq.s32.totalorder %s10, 3
      %p65 = por %p63, %p64
      %p66 = scmp.ne.s32.totalorder %s58, %s61
      %p67 = scmp.eq.s32.totalorder %s10, 0
      %p68 = por %p66, %p67
      %p69 = scmp.ne.s32.totalorder %s58, %s61
      %p70 = scmp.eq.s32.totalorder %s15, 3
      %p71 = por %p69, %p70
      %p72 = scmp.ne.s32.totalorder %s61, %s62
      %p73 = scmp.eq.s32.totalorder %s15, 0
      %p74 = por %p72, %p73
      %p75 = scmp.ne.s32.totalorder %s61, %s62
      %p76 = scmp.eq.s32.totalorder %s16, 3
      %p77 = por %p75, %p76
      %p79 = scmp.ne.s32.totalorder %s62, %s78
      %p80 = scmp.eq.s32.totalorder %s16, 0
      %p81 = por %p79, %p80
      %s82 = ssub.s32 %s18, %s25
      %p83 = scmp.eq.s32.totalorder %s82, 0
      %s85 = sadd.s32 %s84, 1
      %s86 = scalar_select %p83, %s84, %s85
      %p89 = pneg %p83
      %p90 = scmp.eq.s32.totalorder %s10, 3
      %p91 = por %p89, %p90
      %p92 = scmp.ne.s32.totalorder %s84, %s87
      %p93 = scmp.eq.s32.totalorder %s10, 0
      %p94 = por %p92, %p93
      %p95 = scmp.ne.s32.totalorder %s84, %s87
      %p96 = scmp.eq.s32.totalorder %s15, 3
      %p97 = por %p95, %p96
      %p98 = scmp.ne.s32.totalorder %s87, %s88
      %p99 = scmp.eq.s32.totalorder %s15, 0
      %p100 = por %p98, %p99
      %p101 = scmp.ne.s32.totalorder %s87, %s88
      %p102 = scmp.eq.s32.totalorder %s16, 3
      %p103 = por %p101, %p102
      %p105 = scmp.ne.s32.totalorder %s88, %s104
      %p106 = scmp.eq.s32.totalorder %s16, 0
      %p107 = por %p105, %p106
      %s108 = ssub.s32 %s17, %s29
      %s109 = ssub.s32 %s18, %s25
      %s110 = sor.u32 %s108, %s109
      %p111 = scmp.eq.s32.totalorder %s110, 0
      %s113 = sadd.s32 %s112, 1
      %s114 = scalar_select %p111, %s112, %s113
      %p117 = pneg %p111
      %p118 = scmp.eq.s32.totalorder %s10, 3
      %p119 = por %p117, %p118
      %p120 = scmp.ne.s32.totalorder %s112, %s115
      %p121 = scmp.eq.s32.totalorder %s10, 0
      %p122 = por %p120, %p121
      %p123 = scmp.ne.s32.totalorder %s112, %s115
      %p124 = scmp.eq.s32.totalorder %s15, 3
      %p125 = por %p123, %p124
      %p126 = scmp.ne.s32.totalorder %s115, %s116
      %p127 = scmp.eq.s32.totalorder %s15, 0
      %p128 = por %p126, %p127
      %p129 = scmp.ne.s32.totalorder %s115, %s116
      %p130 = scmp.eq.s32.totalorder %s16, 3
      %p131 = por %p129, %p130
      %p133 = scmp.ne.s32.totalorder %s116, %s132
      %p134 = scmp.eq.s32.totalorder %s16, 0
      %p135 = por %p133, %p134
      %p136 = scmp.le.s32.totalorder 1, %s10
      %p137 = scmp.lt.s32.totalorder %s10, 5
      %p138 = pnand %p136, %p137
      %p139 = pneg %p138
      // Predicated region
      $region9: #{_fused_matmul_impl.1} parent=5 // pred_check
        _
      $region10: #{_fused_matmul_impl.1} parent=5 // pred_check_branch
        %141 = sbr.rel (%p138) target = $region12
      $region11: #{_fused_matmul_impl.1} parent=5 // pred_region
        %s142 = ssub.s32 %s10, 1
        // Predicated region
        $region13: #{_fused_matmul_impl.1} parent=11 // pred_check
          %p143 = pneg %p74
        $region14: #{_fused_matmul_impl.1} parent=11 // pred_check_branch
          %145 = sbr.rel (%p143) target = $region16
        $region15: #{_fused_matmul_impl.1} parent=11 // pred_region
          %p146 = scmp.lt.s32.totalorder %s20, 0
          %s147 = scalar_select %p146, %s20, 0
          %s148 = smul.addr %s147, 2
          %s149 = scalar_lea.vmem %s1, %s148
        $region16: #{_fused_matmul_impl.1} parent=11 // pred_fallthru
          _
        // Predicated region
        $region17: #{_fused_matmul_impl.1} parent=11 // pred_check
          %p150 = pneg %p100
        $region18: #{_fused_matmul_impl.1} parent=11 // pred_check_branch
          %152 = sbr.rel (%p150) target = $region20
        $region19: #{_fused_matmul_impl.1} parent=11 // pred_region
          %154 = vsyncadd [#allocation3], 0
          %s155 = scalar_lea.hbm %s2, %s20
          %s157 = sshll.u32 %s155, 4
          %s158 = int_to_ptr.hbm [resolvable:$true] %s157
          %s159 = sshll.u32 [#allocation2], 4
          %s160 = int_to_ptr.vmem [resolvable:$true] %s159
          %162 = dma.hbm_to_vmem [thread:$0]  %s158, 16, %s160, [#allocation3]
        $region20: #{_fused_matmul_impl.1} parent=11 // pred_fallthru
          _
      $region12: #{_fused_matmul_impl.1} parent=5 // pred_fallthru
        _
      %p163 = scmp.lt.s32.totalorder %s10, 4
      // Predicated region
      $region21: #{_fused_matmul_impl.1} parent=5 // pred_check
        %p164 = pneg %p163
      $region22: #{_fused_matmul_impl.1} parent=5 // pred_check_branch
        %166 = sbr.rel (%p164) target = $region24
      $region23: #{_fused_matmul_impl.1} parent=5 // pred_region
        // Predicated region
        $region25: #{_fused_matmul_impl.1} parent=23 // pred_check
          %p167 = pneg %p42
        $region26: #{_fused_matmul_impl.1} parent=23 // pred_check_branch
          %169 = sbr.rel (%p167) target = $region28
        $region27: #{_fused_matmul_impl.1} parent=23 // pred_region
          %s170 = smul.u32 128, %s17
          %p171 = scmp.lt.s32.totalorder %s170, 511
          %s172 = scalar_select %p171, %s170, 511
          %s173 = smul.addr %s172, 4
          %s174 = scalar_lea.vmem %s0, %s173
          %s175 = smul.u32 128, %s17
        $region28: #{_fused_matmul_impl.1} parent=23 // pred_fallthru
          _
      $region24: #{_fused_matmul_impl.1} parent=5 // pred_fallthru
        _
      %p176 = scmp.le.s32.totalorder 1, %s10
      %p177 = scmp.lt.s32.totalorder %s10, 5
      %p178 = pnand %p176, %p177
      %p179 = pneg %p178
      // Predicated region
      $region29: #{_fused_matmul_impl.1} parent=5 // pred_check
        _
      $region30: #{_fused_matmul_impl.1} parent=5 // pred_check_branch
        %181 = sbr.rel (%p178) target = $region32
      $region31: #{_fused_matmul_impl.1} parent=5 // pred_region
        %s182 = ssub.s32 %s10, 1
        // Predicated region
        $region33: #{_fused_matmul_impl.1} parent=31 // pred_check
          %p183 = pneg %p100
        $region34: #{_fused_matmul_impl.1} parent=31 // pred_check_branch
          %185 = sbr.rel (%p183) target = $region36
        $region35: #{_fused_matmul_impl.1} parent=31 // pred_region
          %187 = dma.done [#allocation3], 16
        $region36: #{_fused_matmul_impl.1} parent=31 // pred_fallthru
          _
        %s188 = smul.u32 128, %s19
        %p189 = scmp.lt.s32.totalorder %s188, 511
        %s190 = scalar_select %p189, %s188, 511
        %s191 = smul.addr %s190, 4
        %s192 = scalar_lea.vmem %s0, %s191
        %p193 = pneg %p48
        %p194 = pneg %p45
        %p195 = scmp.lt.s32.totalorder %s20, 0
        %s196 = scalar_select %p195, %s20, 0
        %s197 = smul.addr %s196, 2
        %s198 = scalar_lea.vmem %s1, %s197
        %p199 = pneg %p74
        %p200 = pneg %p71
        %p201 = pneg %p100
        %p202 = pneg %p97
        %p203 = pneg %p128
        %p204 = pneg %p125
        %s205 = smul.u32 128, %s19
        %p206 = scmp.lt.s32.totalorder %s205, 511
        %s207 = scalar_select %p206, %s205, 511
        %p208 = scmp.lt.s32.totalorder %s20, 0
        %s209 = scalar_select %p208, %s20, 0
        %s210 = sadd.s32 %s209, %s207
        %s211 = smul.addr %s210, 8
        %s212 = scalar_lea.vmem %s3, %s211
        %s213 = smul.u32 128, %s19
        %p214 = scmp.lt.s32.totalorder %s213, 511
        %s215 = scalar_select %p214, %s213, 511
        %s216 = smul.addr %s215, 4
        %s217 = scalar_lea.vmem %s0, %s216
        %s218 = smul.u32 128, %s19
        %p219 = scmp.lt.s32.totalorder %s20, 0
        %s220 = scalar_select %p219, %s20, 0
        %s221 = smul.addr %s220, 2
        %s222 = scalar_lea.vmem %s1, %s221
        %s223 = smul.u32 128, %s19
        %p224 = scmp.lt.s32.totalorder %s223, 511
        %s225 = scalar_select %p224, %s223, 511
        %p226 = scmp.lt.s32.totalorder %s20, 0
        %s227 = scalar_select %p226, %s20, 0
        %s228 = sadd.s32 %s227, %s225
        %s229 = smul.addr %s228, 8
        %s230 = scalar_lea.vmem %s3, %s229
        %s231 = smul.u32 128, %s19
        %v233 = vld [vmem:[%s217] sm:$0xf]
        %v234 = vld [vmem:[%s217 + $0x4] sm:$0xf]
        %v235 = vld [vmem:[%s217 + $0x8] sm:$0xf]
        %v236 = vld [vmem:[%s217 + $0xc] sm:$0xf]
        %v237 = vld [vmem:[%s217 + $0x10] sm:$0xf]
        %v238 = vld [vmem:[%s217 + $0x14] sm:$0xf]
        %v239 = vld [vmem:[%s217 + $0x18] sm:$0xf]
        %v240 = vld [vmem:[%s217 + $0x1c] sm:$0xf]
        %v241 = vld [vmem:[%s217 + $0x20] sm:$0xf]
        %v242 = vld [vmem:[%s217 + $0x24] sm:$0xf]
        %v243 = vld [vmem:[%s217 + $0x28] sm:$0xf]
        %v244 = vld [vmem:[%s217 + $0x2c] sm:$0xf]
        %v245 = vld [vmem:[%s217 + $0x30] sm:$0xf]
        %v246 = vld [vmem:[%s217 + $0x34] sm:$0xf]
        %v247 = vld [vmem:[%s217 + $0x38] sm:$0xf]
        %v248 = vld [vmem:[%s217 + $0x3c] sm:$0xf]
        %v249 = vld [vmem:[%s217 + $0x40] sm:$0xf]
        %v250 = vld [vmem:[%s217 + $0x44] sm:$0xf]
        %v251 = vld [vmem:[%s217 + $0x48] sm:$0xf]
        %v252 = vld [vmem:[%s217 + $0x4c] sm:$0xf]
        %v253 = vld [vmem:[%s217 + $0x50] sm:$0xf]
        %v254 = vld [vmem:[%s217 + $0x54] sm:$0xf]
        %v255 = vld [vmem:[%s217 + $0x58] sm:$0xf]
        %v256 = vld [vmem:[%s217 + $0x5c] sm:$0xf]
        %v257 = vld [vmem:[%s217 + $0x60] sm:$0xf]
        %v258 = vld [vmem:[%s217 + $0x64] sm:$0xf]
        %v259 = vld [vmem:[%s217 + $0x68] sm:$0xf]
        %v260 = vld [vmem:[%s217 + $0x6c] sm:$0xf]
        %v261 = vld [vmem:[%s217 + $0x70] sm:$0xf]
        %v262 = vld [vmem:[%s217 + $0x74] sm:$0xf]
        %v263 = vld [vmem:[%s217 + $0x78] sm:$0xf]
        %v264 = vld [vmem:[%s217 + $0x7c] sm:$0xf]
        %v265 = vld [vmem:[%s217 + $0x80] sm:$0xf]
        %v266 = vld [vmem:[%s217 + $0x84] sm:$0xf]
        %v267 = vld [vmem:[%s217 + $0x88] sm:$0xf]
        %v268 = vld [vmem:[%s217 + $0x8c] sm:$0xf]
        %v269 = vld [vmem:[%s217 + $0x90] sm:$0xf]
        %v270 = vld [vmem:[%s217 + $0x94] sm:$0xf]
        %v271 = vld [vmem:[%s217 + $0x98] sm:$0xf]
        %v272 = vld [vmem:[%s217 + $0x9c] sm:$0xf]
        %v273 = vld [vmem:[%s217 + $0xa0] sm:$0xf]
        %v274 = vld [vmem:[%s217 + $0xa4] sm:$0xf]
        %v275 = vld [vmem:[%s217 + $0xa8] sm:$0xf]
        %v276 = vld [vmem:[%s217 + $0xac] sm:$0xf]
        %v277 = vld [vmem:[%s217 + $0xb0] sm:$0xf]
        %v278 = vld [vmem:[%s217 + $0xb4] sm:$0xf]
        %v279 = vld [vmem:[%s217 + $0xb8] sm:$0xf]
        %v280 = vld [vmem:[%s217 + $0xbc] sm:$0xf]
        %v281 = vld [vmem:[%s217 + $0xc0] sm:$0xf]
        %v282 = vld [vmem:[%s217 + $0xc4] sm:$0xf]
        %v283 = vld [vmem:[%s217 + $0xc8] sm:$0xf]
        %v284 = vld [vmem:[%s217 + $0xcc] sm:$0xf]
        %v285 = vld [vmem:[%s217 + $0xd0] sm:$0xf]
        %v286 = vld [vmem:[%s217 + $0xd4] sm:$0xf]
        %v287 = vld [vmem:[%s217 + $0xd8] sm:$0xf]
        %v288 = vld [vmem:[%s217 + $0xdc] sm:$0xf]
        %v289 = vld [vmem:[%s217 + $0xe0] sm:$0xf]
        %v290 = vld [vmem:[%s217 + $0xe4] sm:$0xf]
        %v291 = vld [vmem:[%s217 + $0xe8] sm:$0xf]
        %v292 = vld [vmem:[%s217 + $0xec] sm:$0xf]
        %v293 = vld [vmem:[%s217 + $0xf0] sm:$0xf]
        %v294 = vld [vmem:[%s217 + $0xf4] sm:$0xf]
        %v295 = vld [vmem:[%s217 + $0xf8] sm:$0xf]
        %v296 = vld [vmem:[%s217 + $0xfc] sm:$0xf]
        %v297 = vld [vmem:[%s217 + $0x100] sm:$0xf]
        %v298 = vld [vmem:[%s217 + $0x104] sm:$0xf]
        %v299 = vld [vmem:[%s217 + $0x108] sm:$0xf]
        %v300 = vld [vmem:[%s217 + $0x10c] sm:$0xf]
        %v301 = vld [vmem:[%s217 + $0x110] sm:$0xf]
        %v302 = vld [vmem:[%s217 + $0x114] sm:$0xf]
        %v303 = vld [vmem:[%s217 + $0x118] sm:$0xf]
        %v304 = vld [vmem:[%s217 + $0x11c] sm:$0xf]
        %v305 = vld [vmem:[%s217 + $0x120] sm:$0xf]
        %v306 = vld [vmem:[%s217 + $0x124] sm:$0xf]
        %v307 = vld [vmem:[%s217 + $0x128] sm:$0xf]
        %v308 = vld [vmem:[%s217 + $0x12c] sm:$0xf]
        %v309 = vld [vmem:[%s217 + $0x130] sm:$0xf]
        %v310 = vld [vmem:[%s217 + $0x134] sm:$0xf]
        %v311 = vld [vmem:[%s217 + $0x138] sm:$0xf]
        %v312 = vld [vmem:[%s217 + $0x13c] sm:$0xf]
        %v313 = vld [vmem:[%s217 + $0x140] sm:$0xf]
        %v314 = vld [vmem:[%s217 + $0x144] sm:$0xf]
        %v315 = vld [vmem:[%s217 + $0x148] sm:$0xf]
        %v316 = vld [vmem:[%s217 + $0x14c] sm:$0xf]
        %v317 = vld [vmem:[%s217 + $0x150] sm:$0xf]
        %v318 = vld [vmem:[%s217 + $0x154] sm:$0xf]
        %v319 = vld [vmem:[%s217 + $0x158] sm:$0xf]
        %v320 = vld [vmem:[%s217 + $0x15c] sm:$0xf]
        %v321 = vld [vmem:[%s217 + $0x160] sm:$0xf]
        %v322 = vld [vmem:[%s217 + $0x164] sm:$0xf]
        %v323 = vld [vmem:[%s217 + $0x168] sm:$0xf]
        %v324 = vld [vmem:[%s217 + $0x16c] sm:$0xf]
        %v325 = vld [vmem:[%s217 + $0x170] sm:$0xf]
        %v326 = vld [vmem:[%s217 + $0x174] sm:$0xf]
        %v327 = vld [vmem:[%s217 + $0x178] sm:$0xf]
        %v328 = vld [vmem:[%s217 + $0x17c] sm:$0xf]
        %v329 = vld [vmem:[%s217 + $0x180] sm:$0xf]
        %v330 = vld [vmem:[%s217 + $0x184] sm:$0xf]
        %v331 = vld [vmem:[%s217 + $0x188] sm:$0xf]
        %v332 = vld [vmem:[%s217 + $0x18c] sm:$0xf]
        %v333 = vld [vmem:[%s217 + $0x190] sm:$0xf]
        %v334 = vld [vmem:[%s217 + $0x194] sm:$0xf]
        %v335 = vld [vmem:[%s217 + $0x198] sm:$0xf]
        %v336 = vld [vmem:[%s217 + $0x19c] sm:$0xf]
        %v337 = vld [vmem:[%s217 + $0x1a0] sm:$0xf]
        %v338 = vld [vmem:[%s217 + $0x1a4] sm:$0xf]
        %v339 = vld [vmem:[%s217 + $0x1a8] sm:$0xf]
        %v340 = vld [vmem:[%s217 + $0x1ac] sm:$0xf]
        %v341 = vld [vmem:[%s217 + $0x1b0] sm:$0xf]
        %v342 = vld [vmem:[%s217 + $0x1b4] sm:$0xf]
        %v343 = vld [vmem:[%s217 + $0x1b8] sm:$0xf]
        %v344 = vld [vmem:[%s217 + $0x1bc] sm:$0xf]
        %v345 = vld [vmem:[%s217 + $0x1c0] sm:$0xf]
        %v346 = vld [vmem:[%s217 + $0x1c4] sm:$0xf]
        %v347 = vld [vmem:[%s217 + $0x1c8] sm:$0xf]
        %v348 = vld [vmem:[%s217 + $0x1cc] sm:$0xf]
        %v349 = vld [vmem:[%s217 + $0x1d0] sm:$0xf]
        %v350 = vld [vmem:[%s217 + $0x1d4] sm:$0xf]
        %v351 = vld [vmem:[%s217 + $0x1d8] sm:$0xf]
        %v352 = vld [vmem:[%s217 + $0x1dc] sm:$0xf]
        %v353 = vld [vmem:[%s217 + $0x1e0] sm:$0xf]
        %v354 = vld [vmem:[%s217 + $0x1e4] sm:$0xf]
        %v355 = vld [vmem:[%s217 + $0x1e8] sm:$0xf]
        %v356 = vld [vmem:[%s217 + $0x1ec] sm:$0xf]
        %v357 = vld [vmem:[%s217 + $0x1f0] sm:$0xf]
        %v358 = vld [vmem:[%s217 + $0x1f4] sm:$0xf]
        %v359 = vld [vmem:[%s217 + $0x1f8] sm:$0xf]
        %v360 = vld [vmem:[%s217 + $0x1fc] sm:$0xf]
        %v361 = vld [vmem:[%s222] sm:$0x3]
        %v362 = vld [vmem:[#allocation2] sm:$0x1]
        %v364 = vperm.slane %v362, 0
        %v494 = vunpack.c.l.b16 %v233
        %v495 = vunpack.c.l.b16 %v234
        %v496 = vunpack.c.l.b16 %v235
        %v497 = vunpack.c.l.b16 %v236
        %v498 = vunpack.c.l.b16 %v237
        %v499 = vunpack.c.l.b16 %v238
        %v500 = vunpack.c.l.b16 %v239
        %v501 = vunpack.c.l.b16 %v240
        %v502 = vunpack.c.l.b16 %v241
        %v503 = vunpack.c.l.b16 %v242
        %v504 = vunpack.c.l.b16 %v243
        %v505 = vunpack.c.l.b16 %v244
        %v506 = vunpack.c.l.b16 %v245
        %v507 = vunpack.c.l.b16 %v246
        %v508 = vunpack.c.l.b16 %v247
        %v509 = vunpack.c.l.b16 %v248
        %v510 = vunpack.c.l.b16 %v249
        %v511 = vunpack.c.l.b16 %v250
        %v512 = vunpack.c.l.b16 %v251
        %v513 = vunpack.c.l.b16 %v252
        %v514 = vunpack.c.l.b16 %v253
        %v515 = vunpack.c.l.b16 %v254
        %v516 = vunpack.c.l.b16 %v255
        %v517 = vunpack.c.l.b16 %v256
        %v518 = vunpack.c.l.b16 %v257
        %v519 = vunpack.c.l.b16 %v258
        %v520 = vunpack.c.l.b16 %v259
        %v521 = vunpack.c.l.b16 %v260
        %v522 = vunpack.c.l.b16 %v261
        %v523 = vunpack.c.l.b16 %v262
        %v524 = vunpack.c.l.b16 %v263
        %v525 = vunpack.c.l.b16 %v264
        %v526 = vunpack.c.l.b16 %v265
        %v527 = vunpack.c.l.b16 %v266
        %v528 = vunpack.c.l.b16 %v267
        %v529 = vunpack.c.l.b16 %v268
        %v530 = vunpack.c.l.b16 %v269
        %v531 = vunpack.c.l.b16 %v270
        %v532 = vunpack.c.l.b16 %v271
        %v533 = vunpack.c.l.b16 %v272
        %v534 = vunpack.c.l.b16 %v273
        %v535 = vunpack.c.l.b16 %v274
        %v536 = vunpack.c.l.b16 %v275
        %v537 = vunpack.c.l.b16 %v276
        %v538 = vunpack.c.l.b16 %v277
        %v539 = vunpack.c.l.b16 %v278
        %v540 = vunpack.c.l.b16 %v279
        %v541 = vunpack.c.l.b16 %v280
        %v542 = vunpack.c.l.b16 %v281
        %v543 = vunpack.c.l.b16 %v282
        %v544 = vunpack.c.l.b16 %v283
        %v545 = vunpack.c.l.b16 %v284
        %v546 = vunpack.c.l.b16 %v285
        %v547 = vunpack.c.l.b16 %v286
        %v548 = vunpack.c.l.b16 %v287
        %v549 = vunpack.c.l.b16 %v288
        %v550 = vunpack.c.l.b16 %v289
        %v551 = vunpack.c.l.b16 %v290
        %v552 = vunpack.c.l.b16 %v291
        %v553 = vunpack.c.l.b16 %v292
        %v554 = vunpack.c.l.b16 %v293
        %v555 = vunpack.c.l.b16 %v294
        %v556 = vunpack.c.l.b16 %v295
        %v557 = vunpack.c.l.b16 %v296
        %v558 = vunpack.c.l.b16 %v297
        %v559 = vunpack.c.l.b16 %v298
        %v560 = vunpack.c.l.b16 %v299
        %v561 = vunpack.c.l.b16 %v300
        %v562 = vunpack.c.l.b16 %v301
        %v563 = vunpack.c.l.b16 %v302
        %v564 = vunpack.c.l.b16 %v303
        %v565 = vunpack.c.l.b16 %v304
        %v566 = vunpack.c.l.b16 %v305
        %v567 = vunpack.c.l.b16 %v306
        %v568 = vunpack.c.l.b16 %v307
        %v569 = vunpack.c.l.b16 %v308
        %v570 = vunpack.c.l.b16 %v309
        %v571 = vunpack.c.l.b16 %v310
        %v572 = vunpack.c.l.b16 %v311
        %v573 = vunpack.c.l.b16 %v312
        %v574 = vunpack.c.l.b16 %v313
        %v575 = vunpack.c.l.b16 %v314
        %v576 = vunpack.c.l.b16 %v315
        %v577 = vunpack.c.l.b16 %v316
        %v578 = vunpack.c.l.b16 %v317
        %v579 = vunpack.c.l.b16 %v318
        %v580 = vunpack.c.l.b16 %v319
        %v581 = vunpack.c.l.b16 %v320
        %v582 = vunpack.c.l.b16 %v321
        %v583 = vunpack.c.l.b16 %v322
        %v584 = vunpack.c.l.b16 %v323
        %v585 = vunpack.c.l.b16 %v324
        %v586 = vunpack.c.l.b16 %v325
        %v587 = vunpack.c.l.b16 %v326
        %v588 = vunpack.c.l.b16 %v327
        %v589 = vunpack.c.l.b16 %v328
        %v590 = vunpack.c.l.b16 %v329
        %v591 = vunpack.c.l.b16 %v330
        %v592 = vunpack.c.l.b16 %v331
        %v593 = vunpack.c.l.b16 %v332
        %v594 = vunpack.c.l.b16 %v333
        %v595 = vunpack.c.l.b16 %v334
        %v596 = vunpack.c.l.b16 %v335
        %v597 = vunpack.c.l.b16 %v336
        %v598 = vunpack.c.l.b16 %v337
        %v599 = vunpack.c.l.b16 %v338
        %v600 = vunpack.c.l.b16 %v339
        %v601 = vunpack.c.l.b16 %v340
        %v602 = vunpack.c.l.b16 %v341
        %v603 = vunpack.c.l.b16 %v342
        %v604 = vunpack.c.l.b16 %v343
        %v605 = vunpack.c.l.b16 %v344
        %v606 = vunpack.c.l.b16 %v345
        %v607 = vunpack.c.l.b16 %v346
        %v608 = vunpack.c.l.b16 %v347
        %v609 = vunpack.c.l.b16 %v348
        %v610 = vunpack.c.l.b16 %v349
        %v611 = vunpack.c.l.b16 %v350
        %v612 = vunpack.c.l.b16 %v351
        %v613 = vunpack.c.l.b16 %v352
        %v614 = vunpack.c.l.b16 %v353
        %v615 = vunpack.c.l.b16 %v354
        %v616 = vunpack.c.l.b16 %v355
        %v617 = vunpack.c.l.b16 %v356
        %v618 = vunpack.c.l.b16 %v357
        %v619 = vunpack.c.l.b16 %v358
        %v620 = vunpack.c.l.b16 %v359
        %v621 = vunpack.c.l.b16 %v360
        %v622 = vpack.c.b16 %v495, %v494
        %v623 = vpack.c.b16 %v497, %v496
        %v624 = vpack.c.b16 %v499, %v498
        %v625 = vpack.c.b16 %v501, %v500
        %v626 = vpack.c.b16 %v503, %v502
        %v627 = vpack.c.b16 %v505, %v504
        %v628 = vpack.c.b16 %v507, %v506
        %v629 = vpack.c.b16 %v509, %v508
        %v630 = vpack.c.b16 %v511, %v510
        %v631 = vpack.c.b16 %v513, %v512
        %v632 = vpack.c.b16 %v515, %v514
        %v633 = vpack.c.b16 %v517, %v516
        %v634 = vpack.c.b16 %v519, %v518
        %v635 = vpack.c.b16 %v521, %v520
        %v636 = vpack.c.b16 %v523, %v522
        %v637 = vpack.c.b16 %v525, %v524
        %v638 = vpack.c.b16 %v527, %v526
        %v639 = vpack.c.b16 %v529, %v528
        %v640 = vpack.c.b16 %v531, %v530
        %v641 = vpack.c.b16 %v533, %v532
        %v642 = vpack.c.b16 %v535, %v534
        %v643 = vpack.c.b16 %v537, %v536
        %v644 = vpack.c.b16 %v539, %v538
        %v645 = vpack.c.b16 %v541, %v540
        %v646 = vpack.c.b16 %v543, %v542
        %v647 = vpack.c.b16 %v545, %v544
        %v648 = vpack.c.b16 %v547, %v546
        %v649 = vpack.c.b16 %v549, %v548
        %v650 = vpack.c.b16 %v551, %v550
        %v651 = vpack.c.b16 %v553, %v552
        %v652 = vpack.c.b16 %v555, %v554
        %v653 = vpack.c.b16 %v557, %v556
        %v654 = vpack.c.b16 %v559, %v558
        %v655 = vpack.c.b16 %v561, %v560
        %v656 = vpack.c.b16 %v563, %v562
        %v657 = vpack.c.b16 %v565, %v564
        %v658 = vpack.c.b16 %v567, %v566
        %v659 = vpack.c.b16 %v569, %v568
        %v660 = vpack.c.b16 %v571, %v570
        %v661 = vpack.c.b16 %v573, %v572
        %v662 = vpack.c.b16 %v575, %v574
        %v663 = vpack.c.b16 %v577, %v576
        %v664 = vpack.c.b16 %v579, %v578
        %v665 = vpack.c.b16 %v581, %v580
        %v666 = vpack.c.b16 %v583, %v582
        %v667 = vpack.c.b16 %v585, %v584
        %v668 = vpack.c.b16 %v587, %v586
        %v669 = vpack.c.b16 %v589, %v588
        %v670 = vpack.c.b16 %v591, %v590
        %v671 = vpack.c.b16 %v593, %v592
        %v672 = vpack.c.b16 %v595, %v594
        %v673 = vpack.c.b16 %v597, %v596
        %v674 = vpack.c.b16 %v599, %v598
        %v675 = vpack.c.b16 %v601, %v600
        %v676 = vpack.c.b16 %v603, %v602
        %v677 = vpack.c.b16 %v605, %v604
        %v678 = vpack.c.b16 %v607, %v606
        %v679 = vpack.c.b16 %v609, %v608
        %v680 = vpack.c.b16 %v611, %v610
        %v681 = vpack.c.b16 %v613, %v612
        %v682 = vpack.c.b16 %v615, %v614
        %v683 = vpack.c.b16 %v617, %v616
        %v684 = vpack.c.b16 %v619, %v618
        %v685 = vpack.c.b16 %v621, %v620
        %vm686 = vcmask 23552
        %v688 = vsel %vm686, %v622, 0
        %v691 = vsel %vm686, %v623, 0
        %v694 = vsel %vm686, %v624, 0
        %v697 = vsel %vm686, %v625, 0
        %v700 = vsel %vm686, %v626, 0
        %v703 = vsel %vm686, %v627, 0
        %v706 = vsel %vm686, %v628, 0
        %v709 = vsel %vm686, %v629, 0
        %v712 = vsel %vm686, %v630, 0
        %v715 = vsel %vm686, %v631, 0
        %v718 = vsel %vm686, %v632, 0
        %v721 = vsel %vm686, %v633, 0
        %v724 = vsel %vm686, %v634, 0
        %v727 = vsel %vm686, %v635, 0
        %v730 = vsel %vm686, %v636, 0
        %v733 = vsel %vm686, %v637, 0
        %v736 = vsel %vm686, %v638, 0
        %v739 = vsel %vm686, %v639, 0
        %v742 = vsel %vm686, %v640, 0
        %v745 = vsel %vm686, %v641, 0
        %v748 = vsel %vm686, %v642, 0
        %v751 = vsel %vm686, %v643, 0
        %v754 = vsel %vm686, %v644, 0
        %v757 = vsel %vm686, %v645, 0
        %v760 = vsel %vm686, %v646, 0
        %v763 = vsel %vm686, %v647, 0
        %v766 = vsel %vm686, %v648, 0
        %v769 = vsel %vm686, %v649, 0
        %v772 = vsel %vm686, %v650, 0
        %v775 = vsel %vm686, %v651, 0
        %v778 = vsel %vm686, %v652, 0
        %v781 = vsel %vm686, %v653, 0
        %v784 = vsel %vm686, %v654, 0
        %v787 = vsel %vm686, %v655, 0
        %v790 = vsel %vm686, %v656, 0
        %v793 = vsel %vm686, %v657, 0
        %v796 = vsel %vm686, %v658, 0
        %v799 = vsel %vm686, %v659, 0
        %v802 = vsel %vm686, %v660, 0
        %v805 = vsel %vm686, %v661, 0
        %v808 = vsel %vm686, %v662, 0
        %v811 = vsel %vm686, %v663, 0
        %v814 = vsel %vm686, %v664, 0
        %v817 = vsel %vm686, %v665, 0
        %v820 = vsel %vm686, %v666, 0
        %v823 = vsel %vm686, %v667, 0
        %v826 = vsel %vm686, %v668, 0
        %v829 = vsel %vm686, %v669, 0
        %v832 = vsel %vm686, %v670, 0
        %v835 = vsel %vm686, %v671, 0
        %v838 = vsel %vm686, %v672, 0
        %v841 = vsel %vm686, %v673, 0
        %v844 = vsel %vm686, %v674, 0
        %v847 = vsel %vm686, %v675, 0
        %v850 = vsel %vm686, %v676, 0
        %v853 = vsel %vm686, %v677, 0
        %v856 = vsel %vm686, %v678, 0
        %v859 = vsel %vm686, %v679, 0
        %v862 = vsel %vm686, %v680, 0
        %v865 = vsel %vm686, %v681, 0
        %v868 = vsel %vm686, %v682, 0
        %v871 = vsel %vm686, %v683, 0
        %v874 = vsel %vm686, %v684, 0
        %v877 = vsel %vm686, %v685, 0
        %vm879 = vcmask 1040384
        %vm880 = vcmask 1041408
        %v881 = vsel %vm879, 4294967295, 65535
        %v882 = vsel %vm880, %v881, 0
        %v884 = vand.u32 %v361, %v882
        %886 = vmatpush.bf16.msra.mxu0 0
        %887 = vmatpush.bf16.msra.mxu0 0
        %888 = vmatpush.bf16.msra.mxu0 0
        %889 = vmatpush.bf16.msra.mxu0 0
        %890 = vmatpush.bf16.msra.mxu0 0
        %891 = vmatpush.bf16.msra.mxu0 0
        %892 = vmatpush.bf16.msra.mxu0 0
        %893 = vmatpush.bf16.msra.mxu0 %v884
        %894 = vmatmul.bf16.gmra.mxu0 %v688
        %v895 = vpop.f32.mrf.mxu0
        %v896 = vadd.f32 %v364, %v895
        %v897 = vpop.f32.mrf.mxu0
        %v898 = vadd.f32 %v364, %v897
        %899 = vmatmul.bf16.gmra.mxu0 %v691
        %v900 = vpop.f32.mrf.mxu0
        %v901 = vadd.f32 %v364, %v900
        %v902 = vpop.f32.mrf.mxu0
        %v903 = vadd.f32 %v364, %v902
        %904 = vmatmul.bf16.gmra.mxu0 %v694
        %v905 = vpop.f32.mrf.mxu0
        %v906 = vadd.f32 %v364, %v905
        %v907 = vpop.f32.mrf.mxu0
        %v908 = vadd.f32 %v364, %v907
        %909 = vmatmul.bf16.gmra.mxu0 %v697
        %v910 = vpop.f32.mrf.mxu0
        %v911 = vadd.f32 %v364, %v910
        %v912 = vpop.f32.mrf.mxu0
        %v913 = vadd.f32 %v364, %v912
        %914 = vmatmul.bf16.gmra.mxu0 %v700
        %v915 = vpop.f32.mrf.mxu0
        %v916 = vadd.f32 %v364, %v915
        %v917 = vpop.f32.mrf.mxu0
        %v918 = vadd.f32 %v364, %v917
        %919 = vmatmul.bf16.gmra.mxu0 %v703
        %v920 = vpop.f32.mrf.mxu0
        %v921 = vadd.f32 %v364, %v920
        %v922 = vpop.f32.mrf.mxu0
        %v923 = vadd.f32 %v364, %v922
        %924 = vmatmul.bf16.gmra.mxu0 %v706
        %v925 = vpop.f32.mrf.mxu0
        %v926 = vadd.f32 %v364, %v925
        %v927 = vpop.f32.mrf.mxu0
        %v928 = vadd.f32 %v364, %v927
        %929 = vmatmul.bf16.gmra.mxu0 %v709
        %v930 = vpop.f32.mrf.mxu0
        %v931 = vadd.f32 %v364, %v930
        %v932 = vpop.f32.mrf.mxu0
        %v933 = vadd.f32 %v364, %v932
        %934 = vmatmul.bf16.gmra.mxu0 %v712
        %v935 = vpop.f32.mrf.mxu0
        %v936 = vadd.f32 %v364, %v935
        %v937 = vpop.f32.mrf.mxu0
        %v938 = vadd.f32 %v364, %v937
        %939 = vmatmul.bf16.gmra.mxu0 %v715
        %v940 = vpop.f32.mrf.mxu0
        %v941 = vadd.f32 %v364, %v940
        %v942 = vpop.f32.mrf.mxu0
        %v943 = vadd.f32 %v364, %v942
        %944 = vmatmul.bf16.gmra.mxu0 %v718
        %v945 = vpop.f32.mrf.mxu0
        %v946 = vadd.f32 %v364, %v945
        %v947 = vpop.f32.mrf.mxu0
        %v948 = vadd.f32 %v364, %v947
        %949 = vmatmul.bf16.gmra.mxu0 %v721
        %v950 = vpop.f32.mrf.mxu0
        %v951 = vadd.f32 %v364, %v950
        %v952 = vpop.f32.mrf.mxu0
        %v953 = vadd.f32 %v364, %v952
        %954 = vmatmul.bf16.gmra.mxu0 %v724
        %v955 = vpop.f32.mrf.mxu0
        %v956 = vadd.f32 %v364, %v955
        %v957 = vpop.f32.mrf.mxu0
        %v958 = vadd.f32 %v364, %v957
        %959 = vmatmul.bf16.gmra.mxu0 %v727
        %v960 = vpop.f32.mrf.mxu0
        %v961 = vadd.f32 %v364, %v960
        %v962 = vpop.f32.mrf.mxu0
        %v963 = vadd.f32 %v364, %v962
        %964 = vmatmul.bf16.gmra.mxu0 %v730
        %v965 = vpop.f32.mrf.mxu0
        %v966 = vadd.f32 %v364, %v965
        %v967 = vpop.f32.mrf.mxu0
        %v968 = vadd.f32 %v364, %v967
        %969 = vmatmul.bf16.gmra.mxu0 %v733
        %v970 = vpop.f32.mrf.mxu0
        %v971 = vadd.f32 %v364, %v970
        %v972 = vpop.f32.mrf.mxu0
        %v973 = vadd.f32 %v364, %v972
        %974 = vmatmul.bf16.gmra.mxu0 %v736
        %v975 = vpop.f32.mrf.mxu0
        %v976 = vadd.f32 %v364, %v975
        %v977 = vpop.f32.mrf.mxu0
        %v978 = vadd.f32 %v364, %v977
        %979 = vmatmul.bf16.gmra.mxu0 %v739
        %v980 = vpop.f32.mrf.mxu0
        %v981 = vadd.f32 %v364, %v980
        %v982 = vpop.f32.mrf.mxu0
        %v983 = vadd.f32 %v364, %v982
        %984 = vmatmul.bf16.gmra.mxu0 %v742
        %v985 = vpop.f32.mrf.mxu0
        %v986 = vadd.f32 %v364, %v985
        %v987 = vpop.f32.mrf.mxu0
        %v988 = vadd.f32 %v364, %v987
        %989 = vmatmul.bf16.gmra.mxu0 %v745
        %v990 = vpop.f32.mrf.mxu0
        %v991 = vadd.f32 %v364, %v990
        %v992 = vpop.f32.mrf.mxu0
        %v993 = vadd.f32 %v364, %v992
        %994 = vmatmul.bf16.gmra.mxu0 %v748
        %v995 = vpop.f32.mrf.mxu0
        %v996 = vadd.f32 %v364, %v995
        %v997 = vpop.f32.mrf.mxu0
        %v998 = vadd.f32 %v364, %v997
        %999 = vmatmul.bf16.gmra.mxu0 %v751
        %v1000 = vpop.f32.mrf.mxu0
        %v1001 = vadd.f32 %v364, %v1000
        %v1002 = vpop.f32.mrf.mxu0
        %v1003 = vadd.f32 %v364, %v1002
        %1004 = vmatmul.bf16.gmra.mxu0 %v754
        %v1005 = vpop.f32.mrf.mxu0
        %v1006 = vadd.f32 %v364, %v1005
        %v1007 = vpop.f32.mrf.mxu0
        %v1008 = vadd.f32 %v364, %v1007
        %1009 = vmatmul.bf16.gmra.mxu0 %v757
        %v1010 = vpop.f32.mrf.mxu0
        %v1011 = vadd.f32 %v364, %v1010
        %v1012 = vpop.f32.mrf.mxu0
        %v1013 = vadd.f32 %v364, %v1012
        %1014 = vmatmul.bf16.gmra.mxu0 %v760
        %v1015 = vpop.f32.mrf.mxu0
        %v1016 = vadd.f32 %v364, %v1015
        %v1017 = vpop.f32.mrf.mxu0
        %v1018 = vadd.f32 %v364, %v1017
        %1019 = vmatmul.bf16.gmra.mxu0 %v763
        %v1020 = vpop.f32.mrf.mxu0
        %v1021 = vadd.f32 %v364, %v1020
        %v1022 = vpop.f32.mrf.mxu0
        %v1023 = vadd.f32 %v364, %v1022
        %1024 = vmatmul.bf16.gmra.mxu0 %v766
        %v1025 = vpop.f32.mrf.mxu0
        %v1026 = vadd.f32 %v364, %v1025
        %v1027 = vpop.f32.mrf.mxu0
        %v1028 = vadd.f32 %v364, %v1027
        %1029 = vmatmul.bf16.gmra.mxu0 %v769
        %v1030 = vpop.f32.mrf.mxu0
        %v1031 = vadd.f32 %v364, %v1030
        %v1032 = vpop.f32.mrf.mxu0
        %v1033 = vadd.f32 %v364, %v1032
        %1034 = vmatmul.bf16.gmra.mxu0 %v772
        %v1035 = vpop.f32.mrf.mxu0
        %v1036 = vadd.f32 %v364, %v1035
        %v1037 = vpop.f32.mrf.mxu0
        %v1038 = vadd.f32 %v364, %v1037
        %1039 = vmatmul.bf16.gmra.mxu0 %v775
        %v1040 = vpop.f32.mrf.mxu0
        %v1041 = vadd.f32 %v364, %v1040
        %v1042 = vpop.f32.mrf.mxu0
        %v1043 = vadd.f32 %v364, %v1042
        %1044 = vmatmul.bf16.gmra.mxu0 %v778
        %v1045 = vpop.f32.mrf.mxu0
        %v1046 = vadd.f32 %v364, %v1045
        %v1047 = vpop.f32.mrf.mxu0
        %v1048 = vadd.f32 %v364, %v1047
        %1049 = vmatmul.bf16.gmra.mxu0 %v781
        %v1050 = vpop.f32.mrf.mxu0
        %v1051 = vadd.f32 %v364, %v1050
        %v1052 = vpop.f32.mrf.mxu0
        %v1053 = vadd.f32 %v364, %v1052
        %1054 = vmatmul.bf16.gmra.mxu0 %v784
        %v1055 = vpop.f32.mrf.mxu0
        %v1056 = vadd.f32 %v364, %v1055
        %v1057 = vpop.f32.mrf.mxu0
        %v1058 = vadd.f32 %v364, %v1057
        %1059 = vmatmul.bf16.gmra.mxu0 %v787
        %v1060 = vpop.f32.mrf.mxu0
        %v1061 = vadd.f32 %v364, %v1060
        %v1062 = vpop.f32.mrf.mxu0
        %v1063 = vadd.f32 %v364, %v1062
        %1064 = vmatmul.bf16.gmra.mxu0 %v790
        %v1065 = vpop.f32.mrf.mxu0
        %v1066 = vadd.f32 %v364, %v1065
        %v1067 = vpop.f32.mrf.mxu0
        %v1068 = vadd.f32 %v364, %v1067
        %1069 = vmatmul.bf16.gmra.mxu0 %v793
        %v1070 = vpop.f32.mrf.mxu0
        %v1071 = vadd.f32 %v364, %v1070
        %v1072 = vpop.f32.mrf.mxu0
        %v1073 = vadd.f32 %v364, %v1072
        %1074 = vmatmul.bf16.gmra.mxu0 %v796
        %v1075 = vpop.f32.mrf.mxu0
        %v1076 = vadd.f32 %v364, %v1075
        %v1077 = vpop.f32.mrf.mxu0
        %v1078 = vadd.f32 %v364, %v1077
        %1079 = vmatmul.bf16.gmra.mxu0 %v799
        %v1080 = vpop.f32.mrf.mxu0
        %v1081 = vadd.f32 %v364, %v1080
        %v1082 = vpop.f32.mrf.mxu0
        %v1083 = vadd.f32 %v364, %v1082
        %1084 = vmatmul.bf16.gmra.mxu0 %v802
        %v1085 = vpop.f32.mrf.mxu0
        %v1086 = vadd.f32 %v364, %v1085
        %v1087 = vpop.f32.mrf.mxu0
        %v1088 = vadd.f32 %v364, %v1087
        %1089 = vmatmul.bf16.gmra.mxu0 %v805
        %v1090 = vpop.f32.mrf.mxu0
        %v1091 = vadd.f32 %v364, %v1090
        %v1092 = vpop.f32.mrf.mxu0
        %v1093 = vadd.f32 %v364, %v1092
        %1094 = vmatmul.bf16.gmra.mxu0 %v808
        %v1095 = vpop.f32.mrf.mxu0
        %v1096 = vadd.f32 %v364, %v1095
        %v1097 = vpop.f32.mrf.mxu0
        %v1098 = vadd.f32 %v364, %v1097
        %1099 = vmatmul.bf16.gmra.mxu0 %v811
        %v1100 = vpop.f32.mrf.mxu0
        %v1101 = vadd.f32 %v364, %v1100
        %v1102 = vpop.f32.mrf.mxu0
        %v1103 = vadd.f32 %v364, %v1102
        %1104 = vmatmul.bf16.gmra.mxu0 %v814
        %v1105 = vpop.f32.mrf.mxu0
        %v1106 = vadd.f32 %v364, %v1105
        %v1107 = vpop.f32.mrf.mxu0
        %v1108 = vadd.f32 %v364, %v1107
        %1109 = vmatmul.bf16.gmra.mxu0 %v817
        %v1110 = vpop.f32.mrf.mxu0
        %v1111 = vadd.f32 %v364, %v1110
        %v1112 = vpop.f32.mrf.mxu0
        %v1113 = vadd.f32 %v364, %v1112
        %1114 = vmatmul.bf16.gmra.mxu0 %v820
        %v1115 = vpop.f32.mrf.mxu0
        %v1116 = vadd.f32 %v364, %v1115
        %v1117 = vpop.f32.mrf.mxu0
        %v1118 = vadd.f32 %v364, %v1117
        %1119 = vmatmul.bf16.gmra.mxu0 %v823
        %v1120 = vpop.f32.mrf.mxu0
        %v1121 = vadd.f32 %v364, %v1120
        %v1122 = vpop.f32.mrf.mxu0
        %v1123 = vadd.f32 %v364, %v1122
        %1124 = vmatmul.bf16.gmra.mxu0 %v826
        %v1125 = vpop.f32.mrf.mxu0
        %v1126 = vadd.f32 %v364, %v1125
        %v1127 = vpop.f32.mrf.mxu0
        %v1128 = vadd.f32 %v364, %v1127
        %1129 = vmatmul.bf16.gmra.mxu0 %v829
        %v1130 = vpop.f32.mrf.mxu0
        %v1131 = vadd.f32 %v364, %v1130
        %v1132 = vpop.f32.mrf.mxu0
        %v1133 = vadd.f32 %v364, %v1132
        %1134 = vmatmul.bf16.gmra.mxu0 %v832
        %v1135 = vpop.f32.mrf.mxu0
        %v1136 = vadd.f32 %v364, %v1135
        %v1137 = vpop.f32.mrf.mxu0
        %v1138 = vadd.f32 %v364, %v1137
        %1139 = vmatmul.bf16.gmra.mxu0 %v835
        %v1140 = vpop.f32.mrf.mxu0
        %v1141 = vadd.f32 %v364, %v1140
        %v1142 = vpop.f32.mrf.mxu0
        %v1143 = vadd.f32 %v364, %v1142
        %1144 = vmatmul.bf16.gmra.mxu0 %v838
        %v1145 = vpop.f32.mrf.mxu0
        %v1146 = vadd.f32 %v364, %v1145
        %v1147 = vpop.f32.mrf.mxu0
        %v1148 = vadd.f32 %v364, %v1147
        %1149 = vmatmul.bf16.gmra.mxu0 %v841
        %v1150 = vpop.f32.mrf.mxu0
        %v1151 = vadd.f32 %v364, %v1150
        %v1152 = vpop.f32.mrf.mxu0
        %v1153 = vadd.f32 %v364, %v1152
        %1154 = vmatmul.bf16.gmra.mxu0 %v844
        %v1155 = vpop.f32.mrf.mxu0
        %v1156 = vadd.f32 %v364, %v1155
        %v1157 = vpop.f32.mrf.mxu0
        %v1158 = vadd.f32 %v364, %v1157
        %1159 = vmatmul.bf16.gmra.mxu0 %v847
        %v1160 = vpop.f32.mrf.mxu0
        %v1161 = vadd.f32 %v364, %v1160
        %v1162 = vpop.f32.mrf.mxu0
        %v1163 = vadd.f32 %v364, %v1162
        %1164 = vmatmul.bf16.gmra.mxu0 %v850
        %v1165 = vpop.f32.mrf.mxu0
        %v1166 = vadd.f32 %v364, %v1165
        %v1167 = vpop.f32.mrf.mxu0
        %v1168 = vadd.f32 %v364, %v1167
        %1169 = vmatmul.bf16.gmra.mxu0 %v853
        %v1170 = vpop.f32.mrf.mxu0
        %v1171 = vadd.f32 %v364, %v1170
        %v1172 = vpop.f32.mrf.mxu0
        %v1173 = vadd.f32 %v364, %v1172
        %1174 = vmatmul.bf16.gmra.mxu0 %v856
        %v1175 = vpop.f32.mrf.mxu0
        %v1176 = vadd.f32 %v364, %v1175
        %v1177 = vpop.f32.mrf.mxu0
        %v1178 = vadd.f32 %v364, %v1177
        %1179 = vmatmul.bf16.gmra.mxu0 %v859
        %v1180 = vpop.f32.mrf.mxu0
        %v1181 = vadd.f32 %v364, %v1180
        %v1182 = vpop.f32.mrf.mxu0
        %v1183 = vadd.f32 %v364, %v1182
        %1184 = vmatmul.bf16.gmra.mxu0 %v862
        %v1185 = vpop.f32.mrf.mxu0
        %v1186 = vadd.f32 %v364, %v1185
        %v1187 = vpop.f32.mrf.mxu0
        %v1188 = vadd.f32 %v364, %v1187
        %1189 = vmatmul.bf16.gmra.mxu0 %v865
        %v1190 = vpop.f32.mrf.mxu0
        %v1191 = vadd.f32 %v364, %v1190
        %v1192 = vpop.f32.mrf.mxu0
        %v1193 = vadd.f32 %v364, %v1192
        %1194 = vmatmul.bf16.gmra.mxu0 %v868
        %v1195 = vpop.f32.mrf.mxu0
        %v1196 = vadd.f32 %v364, %v1195
        %v1197 = vpop.f32.mrf.mxu0
        %v1198 = vadd.f32 %v364, %v1197
        %1199 = vmatmul.bf16.gmra.mxu0 %v871
        %v1200 = vpop.f32.mrf.mxu0
        %v1201 = vadd.f32 %v364, %v1200
        %v1202 = vpop.f32.mrf.mxu0
        %v1203 = vadd.f32 %v364, %v1202
        %1204 = vmatmul.bf16.gmra.mxu0 %v874
        %v1205 = vpop.f32.mrf.mxu0
        %v1206 = vadd.f32 %v364, %v1205
        %v1207 = vpop.f32.mrf.mxu0
        %v1208 = vadd.f32 %v364, %v1207
        %1209 = vmatmul.bf16.gmra.mxu0 %v877
        %v1210 = vpop.f32.mrf.mxu0
        %v1211 = vadd.f32 %v364, %v1210
        %v1212 = vpop.f32.mrf.mxu0
        %v1213 = vadd.f32 %v364, %v1212
        %1214 = vdwg.mxu0
        %v1215 = vmax.f32 %v896, 0.0
        %v1216 = vmax.f32 %v898, 0.0
        %v1217 = vmax.f32 %v901, 0.0
        %v1218 = vmax.f32 %v903, 0.0
        %v1219 = vmax.f32 %v906, 0.0
        %v1220 = vmax.f32 %v908, 0.0
        %v1221 = vmax.f32 %v911, 0.0
        %v1222 = vmax.f32 %v913, 0.0
        %v1223 = vmax.f32 %v916, 0.0
        %v1224 = vmax.f32 %v918, 0.0
        %v1225 = vmax.f32 %v921, 0.0
        %v1226 = vmax.f32 %v923, 0.0
        %v1227 = vmax.f32 %v926, 0.0
        %v1228 = vmax.f32 %v928, 0.0
        %v1229 = vmax.f32 %v931, 0.0
        %v1230 = vmax.f32 %v933, 0.0
        %v1231 = vmax.f32 %v936, 0.0
        %v1232 = vmax.f32 %v938, 0.0
        %v1233 = vmax.f32 %v941, 0.0
        %v1234 = vmax.f32 %v943, 0.0
        %v1235 = vmax.f32 %v946, 0.0
        %v1236 = vmax.f32 %v948, 0.0
        %v1237 = vmax.f32 %v951, 0.0
        %v1238 = vmax.f32 %v953, 0.0
        %v1239 = vmax.f32 %v956, 0.0
        %v1240 = vmax.f32 %v958, 0.0
        %v1241 = vmax.f32 %v961, 0.0
        %v1242 = vmax.f32 %v963, 0.0
        %v1243 = vmax.f32 %v966, 0.0
        %v1244 = vmax.f32 %v968, 0.0
        %v1245 = vmax.f32 %v971, 0.0
        %v1246 = vmax.f32 %v973, 0.0
        %v1247 = vmax.f32 %v976, 0.0
        %v1248 = vmax.f32 %v978, 0.0
        %v1249 = vmax.f32 %v981, 0.0
        %v1250 = vmax.f32 %v983, 0.0
        %v1251 = vmax.f32 %v986, 0.0
        %v1252 = vmax.f32 %v988, 0.0
        %v1253 = vmax.f32 %v991, 0.0
        %v1254 = vmax.f32 %v993, 0.0
        %v1255 = vmax.f32 %v996, 0.0
        %v1256 = vmax.f32 %v998, 0.0
        %v1257 = vmax.f32 %v1001, 0.0
        %v1258 = vmax.f32 %v1003, 0.0
        %v1259 = vmax.f32 %v1006, 0.0
        %v1260 = vmax.f32 %v1008, 0.0
        %v1261 = vmax.f32 %v1011, 0.0
        %v1262 = vmax.f32 %v1013, 0.0
        %v1263 = vmax.f32 %v1016, 0.0
        %v1264 = vmax.f32 %v1018, 0.0
        %v1265 = vmax.f32 %v1021, 0.0
        %v1266 = vmax.f32 %v1023, 0.0
        %v1267 = vmax.f32 %v1026, 0.0
        %v1268 = vmax.f32 %v1028, 0.0
        %v1269 = vmax.f32 %v1031, 0.0
        %v1270 = vmax.f32 %v1033, 0.0
        %v1271 = vmax.f32 %v1036, 0.0
        %v1272 = vmax.f32 %v1038, 0.0
        %v1273 = vmax.f32 %v1041, 0.0
        %v1274 = vmax.f32 %v1043, 0.0
        %v1275 = vmax.f32 %v1046, 0.0
        %v1276 = vmax.f32 %v1048, 0.0
        %v1277 = vmax.f32 %v1051, 0.0
        %v1278 = vmax.f32 %v1053, 0.0
        %v1279 = vmax.f32 %v1056, 0.0
        %v1280 = vmax.f32 %v1058, 0.0
        %v1281 = vmax.f32 %v1061, 0.0
        %v1282 = vmax.f32 %v1063, 0.0
        %v1283 = vmax.f32 %v1066, 0.0
        %v1284 = vmax.f32 %v1068, 0.0
        %v1285 = vmax.f32 %v1071, 0.0
        %v1286 = vmax.f32 %v1073, 0.0
        %v1287 = vmax.f32 %v1076, 0.0
        %v1288 = vmax.f32 %v1078, 0.0
        %v1289 = vmax.f32 %v1081, 0.0
        %v1290 = vmax.f32 %v1083, 0.0
        %v1291 = vmax.f32 %v1086, 0.0
        %v1292 = vmax.f32 %v1088, 0.0
        %v1293 = vmax.f32 %v1091, 0.0
        %v1294 = vmax.f32 %v1093, 0.0
        %v1295 = vmax.f32 %v1096, 0.0
        %v1296 = vmax.f32 %v1098, 0.0
        %v1297 = vmax.f32 %v1101, 0.0
        %v1298 = vmax.f32 %v1103, 0.0
        %v1299 = vmax.f32 %v1106, 0.0
        %v1300 = vmax.f32 %v1108, 0.0
        %v1301 = vmax.f32 %v1111, 0.0
        %v1302 = vmax.f32 %v1113, 0.0
        %v1303 = vmax.f32 %v1116, 0.0
        %v1304 = vmax.f32 %v1118, 0.0
        %v1305 = vmax.f32 %v1121, 0.0
        %v1306 = vmax.f32 %v1123, 0.0
        %v1307 = vmax.f32 %v1126, 0.0
        %v1308 = vmax.f32 %v1128, 0.0
        %v1309 = vmax.f32 %v1131, 0.0
        %v1310 = vmax.f32 %v1133, 0.0
        %v1311 = vmax.f32 %v1136, 0.0
        %v1312 = vmax.f32 %v1138, 0.0
        %v1313 = vmax.f32 %v1141, 0.0
        %v1314 = vmax.f32 %v1143, 0.0
        %v1315 = vmax.f32 %v1146, 0.0
        %v1316 = vmax.f32 %v1148, 0.0
        %v1317 = vmax.f32 %v1151, 0.0
        %v1318 = vmax.f32 %v1153, 0.0
        %v1319 = vmax.f32 %v1156, 0.0
        %v1320 = vmax.f32 %v1158, 0.0
        %v1321 = vmax.f32 %v1161, 0.0
        %v1322 = vmax.f32 %v1163, 0.0
        %v1323 = vmax.f32 %v1166, 0.0
        %v1324 = vmax.f32 %v1168, 0.0
        %v1325 = vmax.f32 %v1171, 0.0
        %v1326 = vmax.f32 %v1173, 0.0
        %v1327 = vmax.f32 %v1176, 0.0
        %v1328 = vmax.f32 %v1178, 0.0
        %v1329 = vmax.f32 %v1181, 0.0
        %v1330 = vmax.f32 %v1183, 0.0
        %v1331 = vmax.f32 %v1186, 0.0
        %v1332 = vmax.f32 %v1188, 0.0
        %v1333 = vmax.f32 %v1191, 0.0
        %v1334 = vmax.f32 %v1193, 0.0
        %v1335 = vmax.f32 %v1196, 0.0
        %v1336 = vmax.f32 %v1198, 0.0
        %v1337 = vmax.f32 %v1201, 0.0
        %v1338 = vmax.f32 %v1203, 0.0
        %v1339 = vmax.f32 %v1206, 0.0
        %v1340 = vmax.f32 %v1208, 0.0
        %v1341 = vmax.f32 %v1211, 0.0
        %v1342 = vmax.f32 %v1213, 0.0
        %vm1343 = vcmask 130048
        %1344 = vst.msk [vmem:[%s230] sm:$0xff] %vm1343, %v1215
        %1345 = vst.msk [vmem:[%s230 + $0x8] sm:$0xff] %vm1343, %v1216
        %1346 = vst.msk [vmem:[%s230 + $0x10] sm:$0xff] %vm1343, %v1217
        %1347 = vst.msk [vmem:[%s230 + $0x18] sm:$0xff] %vm1343, %v1218
        %1348 = vst.msk [vmem:[%s230 + $0x20] sm:$0xff] %vm1343, %v1219
        %1349 = vst.msk [vmem:[%s230 + $0x28] sm:$0xff] %vm1343, %v1220
        %1350 = vst.msk [vmem:[%s230 + $0x30] sm:$0xff] %vm1343, %v1221
        %1351 = vst.msk [vmem:[%s230 + $0x38] sm:$0xff] %vm1343, %v1222
        %1352 = vst.msk [vmem:[%s230 + $0x40] sm:$0xff] %vm1343, %v1223
        %1353 = vst.msk [vmem:[%s230 + $0x48] sm:$0xff] %vm1343, %v1224
        %1354 = vst.msk [vmem:[%s230 + $0x50] sm:$0xff] %vm1343, %v1225
        %1355 = vst.msk [vmem:[%s230 + $0x58] sm:$0xff] %vm1343, %v1226
        %1356 = vst.msk [vmem:[%s230 + $0x60] sm:$0xff] %vm1343, %v1227
        %1357 = vst.msk [vmem:[%s230 + $0x68] sm:$0xff] %vm1343, %v1228
        %1358 = vst.msk [vmem:[%s230 + $0x70] sm:$0xff] %vm1343, %v1229
        %1359 = vst.msk [vmem:[%s230 + $0x78] sm:$0xff] %vm1343, %v1230
        %1360 = vst.msk [vmem:[%s230 + $0x80] sm:$0xff] %vm1343, %v1231
        %1361 = vst.msk [vmem:[%s230 + $0x88] sm:$0xff] %vm1343, %v1232
        %1362 = vst.msk [vmem:[%s230 + $0x90] sm:$0xff] %vm1343, %v1233
        %1363 = vst.msk [vmem:[%s230 + $0x98] sm:$0xff] %vm1343, %v1234
        %1364 = vst.msk [vmem:[%s230 + $0xa0] sm:$0xff] %vm1343, %v1235
        %1365 = vst.msk [vmem:[%s230 + $0xa8] sm:$0xff] %vm1343, %v1236
        %1366 = vst.msk [vmem:[%s230 + $0xb0] sm:$0xff] %vm1343, %v1237
        %1367 = vst.msk [vmem:[%s230 + $0xb8] sm:$0xff] %vm1343, %v1238
        %1368 = vst.msk [vmem:[%s230 + $0xc0] sm:$0xff] %vm1343, %v1239
        %1369 = vst.msk [vmem:[%s230 + $0xc8] sm:$0xff] %vm1343, %v1240
        %1370 = vst.msk [vmem:[%s230 + $0xd0] sm:$0xff] %vm1343, %v1241
        %1371 = vst.msk [vmem:[%s230 + $0xd8] sm:$0xff] %vm1343, %v1242
        %1372 = vst.msk [vmem:[%s230 + $0xe0] sm:$0xff] %vm1343, %v1243
        %1373 = vst.msk [vmem:[%s230 + $0xe8] sm:$0xff] %vm1343, %v1244
        %1374 = vst.msk [vmem:[%s230 + $0xf0] sm:$0xff] %vm1343, %v1245
        %1375 = vst.msk [vmem:[%s230 + $0xf8] sm:$0xff] %vm1343, %v1246
        %1376 = vst.msk [vmem:[%s230 + $0x100] sm:$0xff] %vm1343, %v1247
        %1377 = vst.msk [vmem:[%s230 + $0x108] sm:$0xff] %vm1343, %v1248
        %1378 = vst.msk [vmem:[%s230 + $0x110] sm:$0xff] %vm1343, %v1249
        %1379 = vst.msk [vmem:[%s230 + $0x118] sm:$0xff] %vm1343, %v1250
        %1380 = vst.msk [vmem:[%s230 + $0x120] sm:$0xff] %vm1343, %v1251
        %1381 = vst.msk [vmem:[%s230 + $0x128] sm:$0xff] %vm1343, %v1252
        %1382 = vst.msk [vmem:[%s230 + $0x130] sm:$0xff] %vm1343, %v1253
        %1383 = vst.msk [vmem:[%s230 + $0x138] sm:$0xff] %vm1343, %v1254
        %1384 = vst.msk [vmem:[%s230 + $0x140] sm:$0xff] %vm1343, %v1255
        %1385 = vst.msk [vmem:[%s230 + $0x148] sm:$0xff] %vm1343, %v1256
        %1386 = vst.msk [vmem:[%s230 + $0x150] sm:$0xff] %vm1343, %v1257
        %1387 = vst.msk [vmem:[%s230 + $0x158] sm:$0xff] %vm1343, %v1258
        %1388 = vst.msk [vmem:[%s230 + $0x160] sm:$0xff] %vm1343, %v1259
        %1389 = vst.msk [vmem:[%s230 + $0x168] sm:$0xff] %vm1343, %v1260
        %1390 = vst.msk [vmem:[%s230 + $0x170] sm:$0xff] %vm1343, %v1261
        %1391 = vst.msk [vmem:[%s230 + $0x178] sm:$0xff] %vm1343, %v1262
        %1392 = vst.msk [vmem:[%s230 + $0x180] sm:$0xff] %vm1343, %v1263
        %1393 = vst.msk [vmem:[%s230 + $0x188] sm:$0xff] %vm1343, %v1264
        %1394 = vst.msk [vmem:[%s230 + $0x190] sm:$0xff] %vm1343, %v1265
        %1395 = vst.msk [vmem:[%s230 + $0x198] sm:$0xff] %vm1343, %v1266
        %1396 = vst.msk [vmem:[%s230 + $0x1a0] sm:$0xff] %vm1343, %v1267
        %1397 = vst.msk [vmem:[%s230 + $0x1a8] sm:$0xff] %vm1343, %v1268
        %1398 = vst.msk [vmem:[%s230 + $0x1b0] sm:$0xff] %vm1343, %v1269
        %1399 = vst.msk [vmem:[%s230 + $0x1b8] sm:$0xff] %vm1343, %v1270
        %1400 = vst.msk [vmem:[%s230 + $0x1c0] sm:$0xff] %vm1343, %v1271
        %1401 = vst.msk [vmem:[%s230 + $0x1c8] sm:$0xff] %vm1343, %v1272
        %1402 = vst.msk [vmem:[%s230 + $0x1d0] sm:$0xff] %vm1343, %v1273
        %1403 = vst.msk [vmem:[%s230 + $0x1d8] sm:$0xff] %vm1343, %v1274
        %1404 = vst.msk [vmem:[%s230 + $0x1e0] sm:$0xff] %vm1343, %v1275
        %1405 = vst.msk [vmem:[%s230 + $0x1e8] sm:$0xff] %vm1343, %v1276
        %1406 = vst.msk [vmem:[%s230 + $0x1f0] sm:$0xff] %vm1343, %v1277
        %1407 = vst.msk [vmem:[%s230 + $0x1f8] sm:$0xff] %vm1343, %v1278
        %1408 = vst.msk [vmem:[%s230 + $0x200] sm:$0xff] %vm1343, %v1279
        %1409 = vst.msk [vmem:[%s230 + $0x208] sm:$0xff] %vm1343, %v1280
        %1410 = vst.msk [vmem:[%s230 + $0x210] sm:$0xff] %vm1343, %v1281
        %1411 = vst.msk [vmem:[%s230 + $0x218] sm:$0xff] %vm1343, %v1282
        %1412 = vst.msk [vmem:[%s230 + $0x220] sm:$0xff] %vm1343, %v1283
        %1413 = vst.msk [vmem:[%s230 + $0x228] sm:$0xff] %vm1343, %v1284
        %1414 = vst.msk [vmem:[%s230 + $0x230] sm:$0xff] %vm1343, %v1285
        %1415 = vst.msk [vmem:[%s230 + $0x238] sm:$0xff] %vm1343, %v1286
        %1416 = vst.msk [vmem:[%s230 + $0x240] sm:$0xff] %vm1343, %v1287
        %1417 = vst.msk [vmem:[%s230 + $0x248] sm:$0xff] %vm1343, %v1288
        %1418 = vst.msk [vmem:[%s230 + $0x250] sm:$0xff] %vm1343, %v1289
        %1419 = vst.msk [vmem:[%s230 + $0x258] sm:$0xff] %vm1343, %v1290
        %1420 = vst.msk [vmem:[%s230 + $0x260] sm:$0xff] %vm1343, %v1291
        %1421 = vst.msk [vmem:[%s230 + $0x268] sm:$0xff] %vm1343, %v1292
        %1422 = vst.msk [vmem:[%s230 + $0x270] sm:$0xff] %vm1343, %v1293
        %1423 = vst.msk [vmem:[%s230 + $0x278] sm:$0xff] %vm1343, %v1294
        %1424 = vst.msk [vmem:[%s230 + $0x280] sm:$0xff] %vm1343, %v1295
        %1425 = vst.msk [vmem:[%s230 + $0x288] sm:$0xff] %vm1343, %v1296
        %1426 = vst.msk [vmem:[%s230 + $0x290] sm:$0xff] %vm1343, %v1297
        %1427 = vst.msk [vmem:[%s230 + $0x298] sm:$0xff] %vm1343, %v1298
        %1428 = vst.msk [vmem:[%s230 + $0x2a0] sm:$0xff] %vm1343, %v1299
        %1429 = vst.msk [vmem:[%s230 + $0x2a8] sm:$0xff] %vm1343, %v1300
        %1430 = vst.msk [vmem:[%s230 + $0x2b0] sm:$0xff] %vm1343, %v1301
        %1431 = vst.msk [vmem:[%s230 + $0x2b8] sm:$0xff] %vm1343, %v1302
        %1432 = vst.msk [vmem:[%s230 + $0x2c0] sm:$0xff] %vm1343, %v1303
        %1433 = vst.msk [vmem:[%s230 + $0x2c8] sm:$0xff] %vm1343, %v1304
        %1434 = vst.msk [vmem:[%s230 + $0x2d0] sm:$0xff] %vm1343, %v1305
        %1435 = vst.msk [vmem:[%s230 + $0x2d8] sm:$0xff] %vm1343, %v1306
        %1436 = vst.msk [vmem:[%s230 + $0x2e0] sm:$0xff] %vm1343, %v1307
        %1437 = vst.msk [vmem:[%s230 + $0x2e8] sm:$0xff] %vm1343, %v1308
        %1438 = vst.msk [vmem:[%s230 + $0x2f0] sm:$0xff] %vm1343, %v1309
        %1439 = vst.msk [vmem:[%s230 + $0x2f8] sm:$0xff] %vm1343, %v1310
        %1440 = vst.msk [vmem:[%s230 + $0x300] sm:$0xff] %vm1343, %v1311
        %1441 = vst.msk [vmem:[%s230 + $0x308] sm:$0xff] %vm1343, %v1312
        %1442 = vst.msk [vmem:[%s230 + $0x310] sm:$0xff] %vm1343, %v1313
        %1443 = vst.msk [vmem:[%s230 + $0x318] sm:$0xff] %vm1343, %v1314
        %1444 = vst.msk [vmem:[%s230 + $0x320] sm:$0xff] %vm1343, %v1315
        %1445 = vst.msk [vmem:[%s230 + $0x328] sm:$0xff] %vm1343, %v1316
        %1446 = vst.msk [vmem:[%s230 + $0x330] sm:$0xff] %vm1343, %v1317
        %1447 = vst.msk [vmem:[%s230 + $0x338] sm:$0xff] %vm1343, %v1318
        %1448 = vst.msk [vmem:[%s230 + $0x340] sm:$0xff] %vm1343, %v1319
        %1449 = vst.msk [vmem:[%s230 + $0x348] sm:$0xff] %vm1343, %v1320
        %1450 = vst.msk [vmem:[%s230 + $0x350] sm:$0xff] %vm1343, %v1321
        %1451 = vst.msk [vmem:[%s230 + $0x358] sm:$0xff] %vm1343, %v1322
        %1452 = vst.msk [vmem:[%s230 + $0x360] sm:$0xff] %vm1343, %v1323
        %1453 = vst.msk [vmem:[%s230 + $0x368] sm:$0xff] %vm1343, %v1324
        %1454 = vst.msk [vmem:[%s230 + $0x370] sm:$0xff] %vm1343, %v1325
        %1455 = vst.msk [vmem:[%s230 + $0x378] sm:$0xff] %vm1343, %v1326
        %1456 = vst.msk [vmem:[%s230 + $0x380] sm:$0xff] %vm1343, %v1327
        %1457 = vst.msk [vmem:[%s230 + $0x388] sm:$0xff] %vm1343, %v1328
        %1458 = vst.msk [vmem:[%s230 + $0x390] sm:$0xff] %vm1343, %v1329
        %1459 = vst.msk [vmem:[%s230 + $0x398] sm:$0xff] %vm1343, %v1330
        %1460 = vst.msk [vmem:[%s230 + $0x3a0] sm:$0xff] %vm1343, %v1331
        %1461 = vst.msk [vmem:[%s230 + $0x3a8] sm:$0xff] %vm1343, %v1332
        %1462 = vst.msk [vmem:[%s230 + $0x3b0] sm:$0xff] %vm1343, %v1333
        %1463 = vst.msk [vmem:[%s230 + $0x3b8] sm:$0xff] %vm1343, %v1334
        %1464 = vst.msk [vmem:[%s230 + $0x3c0] sm:$0xff] %vm1343, %v1335
        %1465 = vst.msk [vmem:[%s230 + $0x3c8] sm:$0xff] %vm1343, %v1336
        %1466 = vst.msk [vmem:[%s230 + $0x3d0] sm:$0xff] %vm1343, %v1337
        %1467 = vst.msk [vmem:[%s230 + $0x3d8] sm:$0xff] %vm1343, %v1338
        %1468 = vst.msk [vmem:[%s230 + $0x3e0] sm:$0xff] %vm1343, %v1339
        %1469 = vst.msk [vmem:[%s230 + $0x3e8] sm:$0xff] %vm1343, %v1340
        %1470 = vst.msk [vmem:[%s230 + $0x3f0] sm:$0xff] %vm1343, %v1341
        %1471 = vst.msk [vmem:[%s230 + $0x3f8] sm:$0xff] %vm1343, %v1342
        %s1472 = smul.u32 128, %s19
        %p1473 = scmp.lt.s32.totalorder %s1472, 511
        %s1474 = scalar_select %p1473, %s1472, 511
        %p1475 = scmp.lt.s32.totalorder %s20, 0
        %s1476 = scalar_select %p1475, %s20, 0
        %s1477 = sadd.s32 %s1476, %s1474
        %s1478 = smul.addr %s1477, 8
        %s1479 = scalar_lea.vmem %s3, %s1478
        // Predicated region
        $region37: #{_fused_matmul_impl.1} parent=31 // pred_check
          %p1480 = pneg %p125
        $region38: #{_fused_matmul_impl.1} parent=31 // pred_check_branch
          %1482 = sbr.rel (%p1480) target = $region40
        $region39: #{_fused_matmul_impl.1} parent=31 // pred_region
          %s1483 = smul.u32 128, %s19
        $region40: #{_fused_matmul_impl.1} parent=31 // pred_fallthru
          _
      $region32: #{_fused_matmul_impl.1} parent=5 // pred_fallthru
        _
      %p1484 = scmp.le.s32.totalorder 2, %s10
      // Predicated region
      $region41: #{_fused_matmul_impl.1} parent=5 // pred_check
        %p1485 = pneg %p1484
      $region42: #{_fused_matmul_impl.1} parent=5 // pred_check_branch
        %1487 = sbr.rel (%p1485) target = $region44
      $region43: #{_fused_matmul_impl.1} parent=5 // pred_region
        %s1488 = ssub.s32 %s10, 2
        // Predicated region
        $region45: #{_fused_matmul_impl.1} parent=43 // pred_check
          %p1489 = pneg %p131
        $region46: #{_fused_matmul_impl.1} parent=43 // pred_check_branch
          %1491 = sbr.rel (%p1489) target = $region48
        $region47: #{_fused_matmul_impl.1} parent=43 // pred_region
          %s1492 = smul.u32 128, %s21
          %p1493 = scmp.lt.s32.totalorder %s1492, 511
          %s1494 = scalar_select %p1493, %s1492, 511
          %p1495 = scmp.lt.s32.totalorder %s22, 0
          %s1496 = scalar_select %p1495, %s22, 0
          %s1497 = sadd.s32 %s1496, %s1494
          %s1498 = smul.addr %s1497, 8
          %s1499 = scalar_lea.vmem %s3, %s1498
        $region48: #{_fused_matmul_impl.1} parent=43 // pred_fallthru
          _
      $region44: #{_fused_matmul_impl.1} parent=5 // pred_fallthru
        _
    $region6: #{_fused_matmul_impl.1} parent=1 // loop_footer
      %s14 = sadd.s32 1, %s10
    $region7: #{_fused_matmul_impl.1} parent=1 // loop_footer_branch
      %9 = sbr.rel target = $region3
    $region8: #{_fused_matmul_impl.1} parent=1 // loop_exit
      _
    %1500 = vsyncpa [#allocation3], 1
    %s1501 = scalar_lea.sflag [#allocation3], 1
    %1502 = vsyncpa %s1501, 1

</llo_original>
